<compile_context>
chip_gen: v7x
topology: tpu7x:2x2x1
jax: 0.10.0
libtpu: 0.0.40
codegen_flags: <defaults>
</compile_context>

<pallas_src>
import functools

import jax
import jax.numpy as jnp
from jax import lax
from jax.experimental import pallas as pl
from jax.experimental.pallas import tpu as pltpu


def _softplus(z):
    # numerically stable softplus (torch.nn.Softplus, beta=1)
    return jnp.maximum(z, 0.0) + jnp.log1p(jnp.exp(-jnp.abs(z)))


def _round_up(x, m):
    return ((x + m - 1) // m) * m


def _rbm_loss_kernel(xs_ref, c_ref, w_ref, bh_ref, out_ref, *,
                     n_h, n_v, tile_h, blocks_per_split, w2_chunk):
    p = pl.program_id(0)                 # core-split axis ("parallel")
    j = pl.program_id(1)                 # h-block reduction axis ("arbitrary")
    blk = p * blocks_per_split + j       # logical h-block index (may overshoot)

    # Per-split resident accumulator init.
    @pl.when(j == 0)
    def _():
        out_ref[...] = jnp.zeros_like(out_ref)

    xs = xs_ref[...]                     # (8, n_v): row 0 = x, row 1 = x_t
    bh = bh_ref[...]                     # (2, tile_h): row 0 = b, row 1 = h_t
    b = bh[0:1, :]
    ht = bh[1:2, :]

    # One MXU call covers both matvecs; W block stays in native (tile_h, n_v)
    # layout (contraction over the shared last dim -> latched transposed, no
    # XLU transpose, no wrapper-side transpose).  Output is lane-dense in h.
    hv = lax.dot_general(xs, w_ref[...], (((1,), (1,)), ((), ())),
                         preferred_element_type=jnp.float32)     # (8, tile_h)
    wx = hv[0:1, :]                      # (1, tile_h) = (W x)[block]
    wxt = hv[1:2, :]                     # (1, tile_h) = (W x_t)[block]

    # Lane-validity mask: the ragged last block (and any duplicate block on the
    # odd-split path) reads stale VMEM beyond n_h; every h-indexed term is
    # select-masked so stale inf/NaN cannot leak into the sums.
    lane = lax.broadcasted_iota(jnp.int32, (1, tile_h), 1)
    valid = (blk * tile_h + lane) < n_h

    sp_sum = jnp.sum(jnp.where(valid, _softplus(wx + b), 0.0), keepdims=True)
    bht_sum = jnp.sum(jnp.where(valid, b * ht, 0.0), keepdims=True)
    hwx_sum = jnp.sum(jnp.where(valid, ht * wxt, 0.0), keepdims=True)
    b2_sum = jnp.sum(jnp.where(valid, b * b, 0.0), keepdims=True)

    # sum(W^2) streamed in row chunks (second consumer of w_ref reads its own
    # slices -> no long live range competing with the matmul operand).
    def w2_body(cidx, acc):
        start = pl.multiple_of(cidx * w2_chunk, w2_chunk)
        wc = w_ref[pl.ds(start, w2_chunk), :]                   # (chunk, n_v)
        row = (blk * tile_h + start
               + lax.broadcasted_iota(jnp.int32, (w2_chunk, 1), 0))
        wcm = jnp.where(row < n_h, wc, 0.0)
        return acc + jnp.sum(wcm * wcm, keepdims=True)

    w2_sum = lax.fori_loop(0, tile_h // w2_chunk, w2_body,
                           jnp.zeros((1, 1), jnp.float32), unroll=True)

    block_term = (-sp_sum + bht_sum + hwx_sum
                  + 0.0005 * (w2_sum * (1.0 / float(n_h * n_v))
                              + b2_sum * (1.0 / float(n_h))))

    # h-independent terms, added exactly once over the whole grid:
    #   -c.x + c.x_t + 5e-4 * mean(c^2)
    @pl.when(jnp.logical_and(p == 0, j == 0))
    def _():
        c = c_ref[...]                   # (1, n_v)
        x = xs[0:1, :]
        xt = xs[1:2, :]
        out_ref[...] += (
            -jnp.sum(c * x, keepdims=True)
            + jnp.sum(c * xt, keepdims=True)
            + 0.0005 * jnp.sum(c * c, keepdims=True) * (1.0 / float(n_v)))

    out_ref[...] += block_term           # (1,1) broadcast over the (8,128) block


def rbm_loss(W, c, b, x, x_t, h_t, *, max_block_bytes=6 * 1024 * 1024):
    """W: (n_h, n_v); c, x, x_t: (n_v,); b, h_t: (n_h,). Returns scalar loss."""
    n_h, n_v = W.shape
    f32 = jnp.float32

    # ---- tile sizing: VMEM-budget driven, multiple of 128 on the h (lane) dim.
    # ~max_block_bytes per W block, double-buffered, stays inside v5e's 16 MiB
    # scoped default and v7x's 32 MiB scoped / 64 MiB physical VMEM.
    budget_rows = (max_block_bytes // (4 * n_v)) // 128 * 128
    budget_rows = max(128, min(4096, budget_rows))
    tile_h = min(budget_rows, _round_up(n_h, 128))   # single block when n_h is small
    # TODO(synk): for very large n_v, add an inner contraction-tiling grid axis
    # over n_v with an (8, tile_h) VMEM accumulator instead of one (tile_h, n_v) block.

    n_blocks = pl.cdiv(n_h, tile_h)

    # Chunk width for the streaming sum(W^2); tile_h is a multiple of 128.
    if tile_h % 512 == 0:
        w2_chunk = 512
    elif tile_h % 256 == 0:
        w2_chunk = 256
    else:
        w2_chunk = 128

    # Split the h-blocks across 2 TensorCores on v7x; harmless short outer loop
    # on single-core chips.
    n_splits = 2 if n_blocks >= 2 else 1
    blocks_per_split = pl.cdiv(n_blocks, n_splits)
    grid = (n_splits, blocks_per_split)

    # ---- tiny layout plumbing (O(n_v + n_h)); W itself is passed untouched.
    W = W.astype(f32)
    xs = (jnp.zeros((8, n_v), f32)
          .at[0].set(x.astype(f32))
          .at[1].set(x_t.astype(f32)))
    bh = jnp.stack([b.astype(f32), h_t.astype(f32)], axis=0)    # (2, n_h)
    c2 = c.reshape(1, n_v).astype(f32)

    def w_map(p, j):
        return (jnp.minimum(p * blocks_per_split + j, n_blocks - 1), 0)

    def bh_map(p, j):
        return (0, jnp.minimum(p * blocks_per_split + j, n_blocks - 1))

    kernel = functools.partial(
        _rbm_loss_kernel, n_h=n_h, n_v=n_v, tile_h=tile_h,
        blocks_per_split=blocks_per_split, w2_chunk=w2_chunk)

    out = pl.pallas_call(
        kernel,
        out_shape=jax.ShapeDtypeStruct((n_splits * 8, 128), f32),
        grid=grid,
        in_specs=[
            pl.BlockSpec((8, n_v), lambda p, j: (0, 0)),       # stacked x / x_t
            pl.BlockSpec((1, n_v), lambda p, j: (0, 0)),       # c
            pl.BlockSpec((tile_h, n_v), w_map),                # native-layout W block
            pl.BlockSpec((2, tile_h), bh_map),                 # stacked b / h_t block
        ],
        out_specs=pl.BlockSpec((8, 128), lambda p, j: (p, 0)),  # per-split accumulator
        compiler_params=pltpu.CompilerParams(
            dimension_semantics=("parallel", "arbitrary"),
            vmem_limit_bytes=32 * 1024 * 1024),
        cost_estimate=pl.CostEstimate(
            flops=(2 * 8 + 3) * n_h * n_v,
            transcendentals=2 * n_h,
            bytes_accessed=4 * n_h * n_v + 8 * 4 * n_v + 4 * 4 * n_h),
    )(xs, c2, W, bh)

    # Every element of a split's (8,128) block holds that split's partial sum.
    partials = out.reshape(n_splits, 8, 128)[:, 0, 0]
    return jnp.sum(partials)


def rbm_loss_ref(W, c, b, x, x_t, h_t):
    F = -c @ x - jnp.sum(jax.nn.softplus(W @ x + b))
    E = -c @ x_t - b @ h_t - h_t @ (W @ x_t)
    reg = 0.0005 * (jnp.mean(W ** 2) + jnp.mean(c ** 2) + jnp.mean(b ** 2))
    return F - E + reg


# TODO(synk): sample_h_knowing_x / sample_x_knowing_h / gibbs_sampling use
# Bernoulli sampling; they are not part of forward() and are not implemented
# here (would use pltpu.prng_seed / pltpu.prng_random_bits if needed).

if __name__ == "__main__":
    # n_h deliberately not a multiple of 128 so the masked ragged-block path is
    # exercised (tile_h rounds 320 -> 384 in the single-block case).
    n_v, n_h = 256, 320
    key = jax.random.PRNGKey(0)
    kW, kc, kb, kx, kxt, kht = jax.random.split(key, 6)

    W = jax.random.normal(kW, (n_h, n_v), dtype=jnp.float32)
    c = 0.1 * jax.random.normal(kc, (n_v,), dtype=jnp.float32)
    b = 0.1 * jax.random.normal(kb, (n_h,), dtype=jnp.float32)

    x = (jax.random.uniform(kx, (n_v,)) > 0.5).astype(jnp.float32)
    x_t = (jax.random.uniform(kxt, (n_v,)) > 0.5).astype(jnp.float32)
    h_t = (jax.random.uniform(kht, (n_h,)) > 0.5).astype(jnp.float32)

    ref = rbm_loss_ref(W, c, b, x, x_t, h_t)

    # Default path: single large block (grid (1,1), zero wasted W traffic).
    loss = jax.block_until_ready(rbm_loss(W, c, b, x, x_t, h_t))
    assert jnp.allclose(loss, ref, rtol=1e-4, atol=1e-4), (loss, ref)

    # Forced small blocks: exercises the multi-block streaming reduction, the
    # ragged-block masking and the 2-way "parallel" core split.
    loss_mb = jax.block_until_ready(
        rbm_loss(W, c, b, x, x_t, h_t, max_block_bytes=128 * 4 * n_v))
    assert jnp.allclose(loss_mb, ref, rtol=1e-4, atol=1e-4), (loss_mb, ref)

    print("KERNEL_OK")
</pallas_src>

<mosaic_0001>
module attributes {stable_mosaic.version = 11 : i64} {
  func.func @_rbm_loss_kernel(%arg0: i32, %arg1: i32, %arg2: memref<8x256xf32, #tpu.memory_space<vmem>>, %arg3: memref<1x256xf32, #tpu.memory_space<vmem>>, %arg4: memref<384x256xf32, #tpu.memory_space<vmem>>, %arg5: memref<2x384xf32, #tpu.memory_space<vmem>>, %arg6: memref<8x128xf32, #tpu.memory_space<vmem>>) attributes {dimension_semantics = [#tpu.dimension_semantics<parallel>, #tpu.dimension_semantics<arbitrary>], iteration_bounds = array<i64: 1, 1>, scalar_prefetch = 0 : i64, scratch_operands = 0 : i64, tpu.core_type = #tpu.core_type<tc>, window_params = [{pipeline_mode = #tpu.pipeline_mode<synchronous>, transform_indices = @transform_0, window_bounds = array<i64: 8, 256>}, {pipeline_mode = #tpu.pipeline_mode<synchronous>, transform_indices = @transform_1, window_bounds = array<i64: 1, 256>}, {transform_indices = @transform_2, window_bounds = array<i64: 384, 256>}, {transform_indices = @transform_3, window_bounds = array<i64: 2, 384>}, {transform_indices = @transform_4, window_bounds = array<i64: 8, 128>}]} {
    %c1_i32 = arith.constant 1 : i32
    %0 = arith.muli %arg0, %c1_i32 : i32
    %1 = arith.addi %0, %arg1 : i32
    %c0_i32 = arith.constant 0 : i32
    %2 = arith.cmpi eq, %arg1, %c0_i32 : i32
    %3 = arith.extui %2 : i1 to i32
    %c0_i32_0 = arith.constant 0 : i32
    %4 = arith.cmpi ne, %3, %c0_i32_0 : i32
    scf.if %4 {
      %cst_47 = arith.constant 0.000000e+00 : f32
      %147 = vector.broadcast %cst_47 : f32 to vector<8x128xf32>
      %c0_48 = arith.constant 0 : index
      %c0_49 = arith.constant 0 : index
      %148 = vector.load %arg6[%c0_48, %c0_49] : memref<8x128xf32, #tpu.memory_space<vmem>>, vector<8x128xf32>
      tpu.vector_store %arg6[%c0_48, %c0_49], %147 {strides = array<i32>} : memref<8x128xf32, #tpu.memory_space<vmem>>, vector<8x128xf32>,
    } else {
    }
    %c0 = arith.constant 0 : index
    %c0_1 = arith.constant 0 : index
    %5 = vector.load %arg2[%c0, %c0_1] : memref<8x256xf32, #tpu.memory_space<vmem>>, vector<8x256xf32>
    %c0_2 = arith.constant 0 : index
    %c0_3 = arith.constant 0 : index
    %6 = vector.load %arg5[%c0_2, %c0_3] : memref<2x384xf32, #tpu.memory_space<vmem>>, vector<2x384xf32>
    %7 = vector.extract_strided_slice %6 {offsets = [0, 0], sizes = [1, 384], strides = [1, 1]} : vector<2x384xf32> to vector<1x384xf32>
    %8 = vector.extract_strided_slice %6 {offsets = [1, 0], sizes = [1, 384], strides = [1, 1]} : vector<2x384xf32> to vector<1x384xf32>
    %c0_4 = arith.constant 0 : index
    %c0_5 = arith.constant 0 : index
    %9 = vector.load %arg4[%c0_4, %c0_5] : memref<384x256xf32, #tpu.memory_space<vmem>>, vector<384x256xf32>
    %cst = arith.constant dense<0.000000e+00> : vector<8x384xf32>
    %10 = tpu.matmul %5, %9, %cst {dimension_numbers = #tpu.dot_dimension_numbers<[1], [1], [0], [0], [0, 0, 1, 0], [], []>} : vector<8x256xf32>, vector<384x256xf32>, vector<8x384xf32> -> vector<8x384xf32>
    %11 = vector.extract_strided_slice %10 {offsets = [0, 0], sizes = [1, 384], strides = [1, 1]} : vector<8x384xf32> to vector<1x384xf32>
    %12 = vector.extract_strided_slice %10 {offsets = [1, 0], sizes = [1, 384], strides = [1, 1]} : vector<8x384xf32> to vector<1x384xf32>
    %13 = tpu.iota {dimensions = array<i32: 1>} : vector<1x384xi32>
    %c384_i32 = arith.constant 384 : i32
    %14 = arith.muli %1, %c384_i32 : i32
    %15 = vector.broadcast %14 : i32 to vector<1x384xi32>
    %16 = arith.addi %15, %13 : vector<1x384xi32>
    %c320_i32 = arith.constant 320 : i32
    %17 = vector.broadcast %c320_i32 : i32 to vector<1x384xi32>
    %18 = arith.cmpi slt, %16, %17 : vector<1x384xi32>
    %19 = arith.addf %11, %7 : vector<1x384xf32>
    %cst_6 = arith.constant 0.000000e+00 : f32
    %20 = vector.broadcast %cst_6 : f32 to vector<1x384xf32>
    %21 = arith.maximumf %19, %20 : vector<1x384xf32>
    %22 = math.absf %19 : vector<1x384xf32>
    %cst_7 = arith.constant 0.000000e+00 : f32
    %23 = vector.broadcast %cst_7 : f32 to vector<1x384xf32>
    %24 = arith.subf %23, %22 : vector<1x384xf32>
    %25 = math.exp %24 : vector<1x384xf32>
    %26 = math.log1p %25 : vector<1x384xf32>
    %27 = arith.addf %21, %26 : vector<1x384xf32>
    %cst_8 = arith.constant 0.000000e+00 : f32
    %28 = vector.broadcast %cst_8 : f32 to vector<1x384xf32>
    %29 = arith.select %18, %27, %28 : vector<1x384xi1>, vector<1x384xf32>
    %30 = vector.shape_cast %29 : vector<1x384xf32> to vector<1x1x384xf32>
    %cst_9 = arith.constant dense<0.000000e+00> : vector<1xf32>
    %31 = vector.multi_reduction <add>, %30, %cst_9 [1, 2] : vector<1x1x384xf32> to vector<1xf32>
    %32 = vector.shape_cast %31 : vector<1xf32> to vector<1x1x1xf32>
    %33 = vector.extract %32[0, 0, 0] : f32 from vector<1x1x1xf32>
    %34 = vector.broadcast %33 : f32 to vector<1x1xf32>
    %35 = arith.mulf %7, %8 : vector<1x384xf32>
    %cst_10 = arith.constant 0.000000e+00 : f32
    %36 = vector.broadcast %cst_10 : f32 to vector<1x384xf32>
    %37 = arith.select %18, %35, %36 : vector<1x384xi1>, vector<1x384xf32>
    %38 = vector.shape_cast %37 : vector<1x384xf32> to vector<1x1x384xf32>
    %cst_11 = arith.constant dense<0.000000e+00> : vector<1xf32>
    %39 = vector.multi_reduction <add>, %38, %cst_11 [1, 2] : vector<1x1x384xf32> to vector<1xf32>
    %40 = vector.shape_cast %39 : vector<1xf32> to vector<1x1x1xf32>
    %41 = vector.extract %40[0, 0, 0] : f32 from vector<1x1x1xf32>
    %42 = vector.broadcast %41 : f32 to vector<1x1xf32>
    %43 = arith.mulf %8, %12 : vector<1x384xf32>
    %cst_12 = arith.constant 0.000000e+00 : f32
    %44 = vector.broadcast %cst_12 : f32 to vector<1x384xf32>
    %45 = arith.select %18, %43, %44 : vector<1x384xi1>, vector<1x384xf32>
    %46 = vector.shape_cast %45 : vector<1x384xf32> to vector<1x1x384xf32>
    %cst_13 = arith.constant dense<0.000000e+00> : vector<1xf32>
    %47 = vector.multi_reduction <add>, %46, %cst_13 [1, 2] : vector<1x1x384xf32> to vector<1xf32>
    %48 = vector.shape_cast %47 : vector<1xf32> to vector<1x1x1xf32>
    %49 = vector.extract %48[0, 0, 0] : f32 from vector<1x1x1xf32>
    %50 = vector.broadcast %49 : f32 to vector<1x1xf32>
    %51 = arith.mulf %7, %7 : vector<1x384xf32>
    %cst_14 = arith.constant 0.000000e+00 : f32
    %52 = vector.broadcast %cst_14 : f32 to vector<1x384xf32>
    %53 = arith.select %18, %51, %52 : vector<1x384xi1>, vector<1x384xf32>
    %54 = vector.shape_cast %53 : vector<1x384xf32> to vector<1x1x384xf32>
    %cst_15 = arith.constant dense<0.000000e+00> : vector<1xf32>
    %55 = vector.multi_reduction <add>, %54, %cst_15 [1, 2] : vector<1x1x384xf32> to vector<1xf32>
    %56 = vector.shape_cast %55 : vector<1xf32> to vector<1x1x1xf32>
    %57 = vector.extract %56[0, 0, 0] : f32 from vector<1x1x1xf32>
    %58 = vector.broadcast %57 : f32 to vector<1x1xf32>
    %cst_16 = arith.constant 0.000000e+00 : f32
    %59 = vector.broadcast %cst_16 : f32 to vector<1x1xf32>
    %c0_i32_17 = arith.constant 0 : i32
    %c128_i32 = arith.constant 128 : i32
    %60 = arith.muli %c0_i32_17, %c128_i32 : i32
    %61 = tpu.assume_multiple %60, 128 : i32
    %62 = arith.index_cast %61 : i32 to index
    %c0_18 = arith.constant 0 : index
    %63 = vector.load %arg4[%62, %c0_18] : memref<384x256xf32, #tpu.memory_space<vmem>>, vector<128x256xf32>
    %c384_i32_19 = arith.constant 384 : i32
    %64 = arith.muli %1, %c384_i32_19 : i32
    %65 = arith.addi %64, %61 : i32
    %66 = tpu.iota {dimensions = array<i32: 0>} : vector<128x1xi32>
    %67 = vector.broadcast %65 : i32 to vector<128x1xi32>
    %68 = arith.addi %67, %66 : vector<128x1xi32>
    %c320_i32_20 = arith.constant 320 : i32
    %69 = vector.broadcast %c320_i32_20 : i32 to vector<128x1xi32>
    %70 = arith.cmpi slt, %68, %69 : vector<128x1xi32>
    %cst_21 = arith.constant 0.000000e+00 : f32
    %71 = vector.shape_cast %70 : vector<128x1xi1> to vector<128x1xi1>
    %72 = vector.broadcast %71 : vector<128x1xi1> to vector<128x256xi1>
    %73 = vector.broadcast %cst_21 : f32 to vector<128x256xf32>
    %74 = arith.select %72, %63, %73 : vector<128x256xi1>, vector<128x256xf32>
    %75 = arith.mulf %74, %74 : vector<128x256xf32>
    %76 = vector.shape_cast %75 : vector<128x256xf32> to vector<1x128x256xf32>
    %cst_22 = arith.constant dense<0.000000e+00> : vector<1xf32>
    %77 = vector.multi_reduction <add>, %76, %cst_22 [1, 2] : vector<1x128x256xf32> to vector<1xf32>
    %78 = vector.shape_cast %77 : vector<1xf32> to vector<1x1x1xf32>
    %79 = vector.extract %78[0, 0, 0] : f32 from vector<1x1x1xf32>
    %80 = vector.broadcast %79 : f32 to vector<1x1xf32>
    %81 = arith.addf %59, %80 : vector<1x1xf32>
    %c1_i32_23 = arith.constant 1 : i32
    %c128_i32_24 = arith.constant 128 : i32
    %82 = arith.muli %c1_i32_23, %c128_i32_24 : i32
    %83 = tpu.assume_multiple %82, 128 : i32
    %84 = arith.index_cast %83 : i32 to index
    %c0_25 = arith.constant 0 : index
    %85 = vector.load %arg4[%84, %c0_25] : memref<384x256xf32, #tpu.memory_space<vmem>>, vector<128x256xf32>
    %c384_i32_26 = arith.constant 384 : i32
    %86 = arith.muli %1, %c384_i32_26 : i32
    %87 = arith.addi %86, %83 : i32
    %88 = tpu.iota {dimensions = array<i32: 0>} : vector<128x1xi32>
    %89 = vector.broadcast %87 : i32 to vector<128x1xi32>
    %90 = arith.addi %89, %88 : vector<128x1xi32>
    %c320_i32_27 = arith.constant 320 : i32
    %91 = vector.broadcast %c320_i32_27 : i32 to vector<128x1xi32>
    %92 = arith.cmpi slt, %90, %91 : vector<128x1xi32>
    %cst_28 = arith.constant 0.000000e+00 : f32
    %93 = vector.shape_cast %92 : vector<128x1xi1> to vector<128x1xi1>
    %94 = vector.broadcast %93 : vector<128x1xi1> to vector<128x256xi1>
    %95 = vector.broadcast %cst_28 : f32 to vector<128x256xf32>
    %96 = arith.select %94, %85, %95 : vector<128x256xi1>, vector<128x256xf32>
    %97 = arith.mulf %96, %96 : vector<128x256xf32>
    %98 = vector.shape_cast %97 : vector<128x256xf32> to vector<1x128x256xf32>
    %cst_29 = arith.constant dense<0.000000e+00> : vector<1xf32>
    %99 = vector.multi_reduction <add>, %98, %cst_29 [1, 2] : vector<1x128x256xf32> to vector<1xf32>
    %100 = vector.shape_cast %99 : vector<1xf32> to vector<1x1x1xf32>
    %101 = vector.extract %100[0, 0, 0] : f32 from vector<1x1x1xf32>
    %102 = vector.broadcast %101 : f32 to vector<1x1xf32>
    %103 = arith.addf %81, %102 : vector<1x1xf32>
    %c2_i32 = arith.constant 2 : i32
    %c128_i32_30 = arith.constant 128 : i32
    %104 = arith.muli %c2_i32, %c128_i32_30 : i32
    %105 = tpu.assume_multiple %104, 128 : i32
    %106 = arith.index_cast %105 : i32 to index
    %c0_31 = arith.constant 0 : index
    %107 = vector.load %arg4[%106, %c0_31] : memref<384x256xf32, #tpu.memory_space<vmem>>, vector<128x256xf32>
    %c384_i32_32 = arith.constant 384 : i32
    %108 = arith.muli %1, %c384_i32_32 : i32
    %109 = arith.addi %108, %105 : i32
    %110 = tpu.iota {dimensions = array<i32: 0>} : vector<128x1xi32>
    %111 = vector.broadcast %109 : i32 to vector<128x1xi32>
    %112 = arith.addi %111, %110 : vector<128x1xi32>
    %c320_i32_33 = arith.constant 320 : i32
    %113 = vector.broadcast %c320_i32_33 : i32 to vector<128x1xi32>
    %114 = arith.cmpi slt, %112, %113 : vector<128x1xi32>
    %cst_34 = arith.constant 0.000000e+00 : f32
    %115 = vector.shape_cast %114 : vector<128x1xi1> to vector<128x1xi1>
    %116 = vector.broadcast %115 : vector<128x1xi1> to vector<128x256xi1>
    %117 = vector.broadcast %cst_34 : f32 to vector<128x256xf32>
    %118 = arith.select %116, %107, %117 : vector<128x256xi1>, vector<128x256xf32>
    %119 = arith.mulf %118, %118 : vector<128x256xf32>
    %120 = vector.shape_cast %119 : vector<128x256xf32> to vector<1x128x256xf32>
    %cst_35 = arith.constant dense<0.000000e+00> : vector<1xf32>
    %121 = vector.multi_reduction <add>, %120, %cst_35 [1, 2] : vector<1x128x256xf32> to vector<1xf32>
    %122 = vector.shape_cast %121 : vector<1xf32> to vector<1x1x1xf32>
    %123 = vector.extract %122[0, 0, 0] : f32 from vector<1x1x1xf32>
    %124 = vector.broadcast %123 : f32 to vector<1x1xf32>
    %125 = arith.addf %103, %124 : vector<1x1xf32>
    %c3_i32 = arith.constant 3 : i32
    %cst_36 = arith.constant 0.000000e+00 : f32
    %126 = vector.broadcast %cst_36 : f32 to vector<1x1xf32>
    %127 = arith.subf %126, %34 : vector<1x1xf32>
    %128 = arith.addf %127, %42 : vector<1x1xf32>
    %129 = arith.addf %128, %50 : vector<1x1xf32>
    %cst_37 = arith.constant 1.22070314E-5 : f32
    %130 = vector.broadcast %cst_37 : f32 to vector<1x1xf32>
    %131 = arith.mulf %125, %130 : vector<1x1xf32>
    %cst_38 = arith.constant 3.125000e-03 : f32
    %132 = vector.broadcast %cst_38 : f32 to vector<1x1xf32>
    %133 = arith.mulf %58, %132 : vector<1x1xf32>
    %134 = arith.addf %131, %133 : vector<1x1xf32>
    %cst_39 = arith.constant 5.000000e-04 : f32
    %135 = vector.broadcast %cst_39 : f32 to vector<1x1xf32>
    %136 = arith.mulf %135, %134 : vector<1x1xf32>
    %137 = arith.addf %129, %136 : vector<1x1xf32>
    %c0_i32_40 = arith.constant 0 : i32
    %138 = arith.cmpi eq, %arg0, %c0_i32_40 : i32
    %c0_i32_41 = arith.constant 0 : i32
    %139 = arith.cmpi eq, %arg1, %c0_i32_41 : i32
    %140 = arith.andi %138, %139 : i1
    %141 = arith.extui %140 : i1 to i32
    %c0_i32_42 = arith.constant 0 : i32
    %142 = arith.cmpi ne, %141, %c0_i32_42 : i32
    scf.if %142 {
      %c0_47 = arith.constant 0 : index
      %c0_48 = arith.constant 0 : index
      %147 = vector.load %arg3[%c0_47, %c0_48] : memref<1x256xf32, #tpu.memory_space<vmem>>, vector<1x256xf32>
      %148 = vector.extract_strided_slice %5 {offsets = [0, 0], sizes = [1, 256], strides = [1, 1]} : vector<8x256xf32> to vector<1x256xf32>
      %149 = vector.extract_strided_slice %5 {offsets = [1, 0], sizes = [1, 256], strides = [1, 1]} : vector<8x256xf32> to vector<1x256xf32>
      %c0_49 = arith.constant 0 : index
      %c0_50 = arith.constant 0 : index
      %150 = vector.load %arg6[%c0_49, %c0_50] : memref<8x128xf32, #tpu.memory_space<vmem>>, vector<8x128xf32>
      %151 = arith.mulf %147, %148 : vector<1x256xf32>
      %152 = vector.shape_cast %151 : vector<1x256xf32> to vector<1x1x256xf32>
      %cst_51 = arith.constant dense<0.000000e+00> : vector<1xf32>
      %153 = vector.multi_reduction <add>, %152, %cst_51 [1, 2] : vector<1x1x256xf32> to vector<1xf32>
      %154 = vector.shape_cast %153 : vector<1xf32> to vector<1x1x1xf32>
      %155 = vector.extract %154[0, 0, 0] : f32 from vector<1x1x1xf32>
      %156 = vector.broadcast %155 : f32 to vector<1x1xf32>
      %cst_52 = arith.constant 0.000000e+00 : f32
      %157 = vector.broadcast %cst_52 : f32 to vector<1x1xf32>
      %158 = arith.subf %157, %156 : vector<1x1xf32>
      %159 = arith.mulf %147, %149 : vector<1x256xf32>
      %160 = vector.shape_cast %159 : vector<1x256xf32> to vector<1x1x256xf32>
      %cst_53 = arith.constant dense<0.000000e+00> : vector<1xf32>
      %161 = vector.multi_reduction <add>, %160, %cst_53 [1, 2] : vector<1x1x256xf32> to vector<1xf32>
      %162 = vector.shape_cast %161 : vector<1xf32> to vector<1x1x1xf32>
      %163 = vector.extract %162[0, 0, 0] : f32 from vector<1x1x1xf32>
      %164 = vector.broadcast %163 : f32 to vector<1x1xf32>
      %165 = arith.addf %158, %164 : vector<1x1xf32>
      %166 = arith.mulf %147, %147 : vector<1x256xf32>
      %167 = vector.shape_cast %166 : vector<1x256xf32> to vector<1x1x256xf32>
      %cst_54 = arith.constant dense<0.000000e+00> : vector<1xf32>
      %168 = vector.multi_reduction <add>, %167, %cst_54 [1, 2] : vector<1x1x256xf32> to vector<1xf32>
      %169 = vector.shape_cast %168 : vector<1xf32> to vector<1x1x1xf32>
      %170 = vector.extract %169[0, 0, 0] : f32 from vector<1x1x1xf32>
      %171 = vector.broadcast %170 : f32 to vector<1x1xf32>
      %cst_55 = arith.constant 5.000000e-04 : f32
      %172 = vector.broadcast %cst_55 : f32 to vector<1x1xf32>
      %173 = arith.mulf %172, %171 : vector<1x1xf32>
      %cst_56 = arith.constant 3.906250e-03 : f32
      %174 = vector.broadcast %cst_56 : f32 to vector<1x1xf32>
      %175 = arith.mulf %173, %174 : vector<1x1xf32>
      %176 = arith.addf %165, %175 : vector<1x1xf32>
      %177 = vector.broadcast %176 : vector<1x1xf32> to vector<8x128xf32>
      %178 = arith.addf %150, %177 : vector<8x128xf32>
      %c0_57 = arith.constant 0 : index
      %c0_58 = arith.constant 0 : index
      %179 = vector.load %arg6[%c0_57, %c0_58] : memref<8x128xf32, #tpu.memory_space<vmem>>, vector<8x128xf32>
      tpu.vector_store %arg6[%c0_57, %c0_58], %178 {strides = array<i32>} : memref<8x128xf32, #tpu.memory_space<vmem>>, vector<8x128xf32>,
    } else {
    }
    %c0_43 = arith.constant 0 : index
    %c0_44 = arith.constant 0 : index
    %143 = vector.load %arg6[%c0_43, %c0_44] : memref<8x128xf32, #tpu.memory_space<vmem>>, vector<8x128xf32>
    %144 = vector.broadcast %137 : vector<1x1xf32> to vector<8x128xf32>
    %145 = arith.addf %143, %144 : vector<8x128xf32>
    %c0_45 = arith.constant 0 : index
    %c0_46 = arith.constant 0 : index
    %146 = vector.load %arg6[%c0_45, %c0_46] : memref<8x128xf32, #tpu.memory_space<vmem>>, vector<8x128xf32>
    tpu.vector_store %arg6[%c0_45, %c0_46], %145 {strides = array<i32>} : memref<8x128xf32, #tpu.memory_space<vmem>>, vector<8x128xf32>,
    return
  }
  func.func @transform_0(%arg0: i32, %arg1: i32) -> (i32, i32) {
    %c0_i32 = arith.constant 0 : i32
    %c0_i32_0 = arith.constant 0 : i32
    %c0_i32_1 = arith.constant 0 : i32
    return %c0_i32, %c0_i32_0 : i32, i32
  }
  func.func @transform_1(%arg0: i32, %arg1: i32) -> (i32, i32) {
    %c0_i32 = arith.constant 0 : i32
    %c0_i32_0 = arith.constant 0 : i32
    %c0_i32_1 = arith.constant 0 : i32
    return %c0_i32, %c0_i32_0 : i32, i32
  }
  func.func @transform_2(%arg0: i32, %arg1: i32) -> (i32, i32) {
    %c1_i32 = arith.constant 1 : i32
    %0 = arith.muli %arg0, %c1_i32 : i32
    %1 = arith.addi %0, %arg1 : i32
    %c0_i32 = arith.constant 0 : i32
    %2 = arith.minsi %1, %c0_i32 : i32
    %c0_i32_0 = arith.constant 0 : i32
    %c0_i32_1 = arith.constant 0 : i32
    return %2, %c0_i32_0 : i32, i32
  }
  func.func @transform_3(%arg0: i32, %arg1: i32) -> (i32, i32) {
    %c1_i32 = arith.constant 1 : i32
    %0 = arith.muli %arg0, %c1_i32 : i32
    %1 = arith.addi %0, %arg1 : i32
    %c0_i32 = arith.constant 0 : i32
    %2 = arith.minsi %1, %c0_i32 : i32
    %c0_i32_0 = arith.constant 0 : i32
    %c0_i32_1 = arith.constant 0 : i32
    return %c0_i32_0, %2 : i32, i32
  }
  func.func @transform_4(%arg0: i32, %arg1: i32) -> (i32, i32) {
    %c0_i32 = arith.constant 0 : i32
    %c0_i32_0 = arith.constant 0 : i32
    return %arg0, %c0_i32 : i32, i32
  }
}

</mosaic_0001>

<llo_original>
// kernel: tpu_custom_call.1
$region0: #{tpu_custom_call.1}
  #allocation0 [shape = 'u32[]', space=smem, size = 0x4, offset = 0x4, fixed_abs, tag = 'smem constant byte address 0x4 - core index']
  #allocation1 [shape = 'u32[144,128]{1,0:T(1,128)}', space=vmem, size = 0x12000, scoped, tag = 'internal scratch']
  %s0 = inlined_call_operand.hbm [shape: f32[8,256], index: 0, kind: input, shape index: {}]
  %s1 = inlined_call_operand.vmem [shape: f32[1,256], index: 1, kind: input, shape index: {}]
  %s2 = inlined_call_operand.hbm [shape: f32[320,256], index: 2, kind: input, shape index: {}]
  %s3 = inlined_call_operand.vmem [shape: f32[2,320], index: 3, kind: input, shape index: {}]
  %s4 = inlined_call_operand.hbm [shape: f32[8,128], index: 4, kind: output, shape index: {}]
  %s5 = sld [smem:[#allocation0]]
  $region42: #{tpu_custom_call.1} parent=0
    _
  %s7 = ssub.s32 1, %s5
  %s8 = scalar_select 0, %s7, %s5
  $region1: #{tpu_custom_call.1} parent=0
    #allocation2 [shape = 'u8[8192]{0}', space=vmem, size = 0x2000, scoped, tag = 'input window, operand 0, single buffered']
    #allocation3 [shape = 's32[1]{0}', space=sflag, size = 0x4, scoped, tag = 'scoped memory for tpu_custom_call.1']
    #allocation4 [shape = 's32[1]{0}', space=sflag, size = 0x4, scoped, tag = 'scoped memory for tpu_custom_call.1']
    #allocation5 [shape = 'u8[393216]{0}', space=vmem, size = 0x60000, scoped, tag = 'input window, operand 2, single buffered']
    #allocation6 [shape = 's32[1]{0}', space=sflag, size = 0x4, scoped, tag = 'scoped memory for tpu_custom_call.1']
    #allocation7 [shape = 'u8[4096]{0}', space=vmem, size = 0x1000, scoped, tag = 'output window, operand 0, single buffered']
    %9 = vsyncpa [#allocation3], 0
    %10 = vsyncpa [#allocation6], 0
    %11 = vsyncpa [#allocation4], 0
    // Predicated region
    $region2: #{tpu_custom_call.1} parent=1 // pred_check
      _
    $region3: #{tpu_custom_call.1} parent=1 // pred_check_branch
      %13 = sbr.rel (0) target = $region5
    $region4: #{tpu_custom_call.1} parent=1 // pred_region
      %s15 = ssub.s32 256, 256
      %16 = vsyncadd [#allocation3], %s15
      %s18 = sshll.u32 [#allocation2], 4
      %s19 = int_to_ptr.vmem [resolvable:$true] %s18
      %21 = dma.hbm_to_vmem [thread:$0]  %s0, 256, %s19, [#allocation3]
    $region5: #{tpu_custom_call.1} parent=1 // pred_fallthru
      _
    // Predicated region
    $region6: #{tpu_custom_call.1} parent=1 // pred_check
      _
    $region7: #{tpu_custom_call.1} parent=1 // pred_check_branch
      %23 = sbr.rel (0) target = $region9
    $region8: #{tpu_custom_call.1} parent=1 // pred_region
      _
    $region9: #{tpu_custom_call.1} parent=1 // pred_fallthru
      _
    // Predicated region
    $region10: #{tpu_custom_call.1} parent=1 // pred_check
      _
    $region11: #{tpu_custom_call.1} parent=1 // pred_check_branch
      %25 = sbr.rel (0) target = $region13
    $region12: #{tpu_custom_call.1} parent=1 // pred_region
      %s26 = sadd.s32 0, 0
      %p27 = scmp.lt.s32.totalorder %s26, 0
      %s28 = scalar_select %p27, %s26, 0
      %s29 = smul.u32 48, %s28
      %s30 = ssub.s32 40, %s29
      %s31 = smul.u32 128, %s30
      %s32 = smul.u32 %s31, 2
      %s34 = ssub.s32 12288, %s32
      %35 = vsyncadd [#allocation6], %s34
      %p36 = scmp.ne.s32.totalorder 0, %s32
      %s37 = smul.addr %s29, 2
      %s38 = smul.addr %s37, 128
      %s39 = scalar_lea.hbm %s2, %s38
      %s40 = smul.u32 16, %s30
      %s41 = sshll.u32 [#allocation5], 4
      %s42 = int_to_ptr.vmem [resolvable:$true] %s41
      %s43 = sshll.u32 %s40, 4
      %47 = dma.hbm_to_vmem [thread:$0]  (%p36), %s39, %s43, %s42, [#allocation6], 256, 256, 16
    $region13: #{tpu_custom_call.1} parent=1 // pred_fallthru
      _
    // Predicated region
    $region14: #{tpu_custom_call.1} parent=1 // pred_check
      _
    $region15: #{tpu_custom_call.1} parent=1 // pred_check_branch
      %49 = sbr.rel (0) target = $region17
    $region16: #{tpu_custom_call.1} parent=1 // pred_region
      %s50 = sadd.s32 0, 0
      %p51 = scmp.lt.s32.totalorder %s50, 0
      %s52 = scalar_select %p51, %s50, 0
      %s53 = smul.u32 3, %s52
      %p54 = scmp.lt.s32.totalorder %s53, 2
      %s55 = scalar_select %p54, %s53, 2
      %s56 = smul.addr %s55, 2
      %s57 = scalar_lea.vmem %s3, %s56
      %s58 = sadd.s32 0, 0
      %p59 = scmp.lt.s32.totalorder %s58, 0
      %s60 = scalar_select %p59, %s58, 0
      %s61 = smul.u32 3, %s60
    $region17: #{tpu_custom_call.1} parent=1 // pred_fallthru
      _
    // Predicated region
    $region18: #{tpu_custom_call.1} parent=1 // pred_check
      _
    $region19: #{tpu_custom_call.1} parent=1 // pred_check_branch
      %63 = sbr.rel (0) target = $region21
    $region20: #{tpu_custom_call.1} parent=1 // pred_region
      %64 = dma.done [#allocation3], 256
    $region21: #{tpu_custom_call.1} parent=1 // pred_fallthru
      _
    // Predicated region
    $region22: #{tpu_custom_call.1} parent=1 // pred_check
      _
    $region23: #{tpu_custom_call.1} parent=1 // pred_check_branch
      %66 = sbr.rel (0) target = $region25
    $region24: #{tpu_custom_call.1} parent=1 // pred_region
      %67 = dma.done [#allocation6], 12288
    $region25: #{tpu_custom_call.1} parent=1 // pred_fallthru
      _
    %s68 = sadd.s32 0, 0
    %p69 = scmp.lt.s32.totalorder %s68, 0
    %s70 = scalar_select %p69, %s68, 0
    %s71 = smul.u32 3, %s70
    %p72 = scmp.lt.s32.totalorder %s71, 2
    %s73 = scalar_select %p72, %s71, 2
    %s74 = smul.addr %s73, 2
    %s75 = scalar_lea.vmem %s3, %s74
    %s76 = sadd.s32 0, 0
    %p77 = scmp.lt.s32.totalorder %s76, 0
    %s78 = scalar_select %p77, %s76, 0
    %s79 = smul.u32 48, %s78
    %s80 = ssub.s32 40, %s79
    %s81 = smul.u32 128, %s80
    %s82 = smul.u32 %s81, 2
    %s83 = sadd.s32 0, 0
    %p84 = scmp.lt.s32.totalorder %s83, 0
    %s85 = scalar_select %p84, %s83, 0
    %s86 = smul.u32 3, %s85
    %p87 = scmp.lt.s32.totalorder %s86, 2
    %s88 = scalar_select %p87, %s86, 2
    %s89 = smul.addr %s88, 2
    %s90 = scalar_lea.vmem %s3, %s89
    %s91 = sadd.s32 0, 0
    %p92 = scmp.lt.s32.totalorder %s91, 0
    %s93 = scalar_select %p92, %s91, 0
    %s94 = smul.u32 3, %s93
    %s95 = sadd.s32 0, 0
    %p96 = scmp.eq.s32.totalorder 0, 0
    // Predicated region
    $region26: #{tpu_custom_call.1} parent=1 // pred_check
      %p97 = pneg %p96
    $region27: #{tpu_custom_call.1} parent=1 // pred_check_branch
      %99 = sbr.rel (%p97) target = $region29
    $region28: #{tpu_custom_call.1} parent=1 // pred_region
      %100 = vst [vmem:[#allocation7] sm:$0xff] 0.0
    $region29: #{tpu_custom_call.1} parent=1 // pred_fallthru
      _
    %v101 = vld [vmem:[#allocation2] sm:$0xff]
    %v102 = vld [vmem:[#allocation2 + $0x8] sm:$0xff]
    %v103 = vld [vmem:[%s90] sm:$0x3f]
    %v104 = vld [vmem:[#allocation5] sm:$0xff]
    %v105 = vld [vmem:[#allocation5 + $0x8] sm:$0xff]
    %v106 = vld [vmem:[#allocation5 + $0x10] sm:$0xff]
    %v107 = vld [vmem:[#allocation5 + $0x18] sm:$0xff]
    %v108 = vld [vmem:[#allocation5 + $0x20] sm:$0xff]
    %v109 = vld [vmem:[#allocation5 + $0x28] sm:$0xff]
    %v110 = vld [vmem:[#allocation5 + $0x30] sm:$0xff]
    %v111 = vld [vmem:[#allocation5 + $0x38] sm:$0xff]
    %v112 = vld [vmem:[#allocation5 + $0x40] sm:$0xff]
    %v113 = vld [vmem:[#allocation5 + $0x48] sm:$0xff]
    %v114 = vld [vmem:[#allocation5 + $0x50] sm:$0xff]
    %v115 = vld [vmem:[#allocation5 + $0x58] sm:$0xff]
    %v116 = vld [vmem:[#allocation5 + $0x60] sm:$0xff]
    %v117 = vld [vmem:[#allocation5 + $0x68] sm:$0xff]
    %v118 = vld [vmem:[#allocation5 + $0x70] sm:$0xff]
    %v119 = vld [vmem:[#allocation5 + $0x78] sm:$0xff]
    %v120 = vld [vmem:[#allocation5 + $0x80] sm:$0xff]
    %v121 = vld [vmem:[#allocation5 + $0x88] sm:$0xff]
    %v122 = vld [vmem:[#allocation5 + $0x90] sm:$0xff]
    %v123 = vld [vmem:[#allocation5 + $0x98] sm:$0xff]
    %v124 = vld [vmem:[#allocation5 + $0xa0] sm:$0xff]
    %v125 = vld [vmem:[#allocation5 + $0xa8] sm:$0xff]
    %v126 = vld [vmem:[#allocation5 + $0xb0] sm:$0xff]
    %v127 = vld [vmem:[#allocation5 + $0xb8] sm:$0xff]
    %v128 = vld [vmem:[#allocation5 + $0xc0] sm:$0xff]
    %v129 = vld [vmem:[#allocation5 + $0xc8] sm:$0xff]
    %v130 = vld [vmem:[#allocation5 + $0xd0] sm:$0xff]
    %v131 = vld [vmem:[#allocation5 + $0xd8] sm:$0xff]
    %v132 = vld [vmem:[#allocation5 + $0xe0] sm:$0xff]
    %v133 = vld [vmem:[#allocation5 + $0xe8] sm:$0xff]
    %v134 = vld [vmem:[#allocation5 + $0xf0] sm:$0xff]
    %v135 = vld [vmem:[#allocation5 + $0xf8] sm:$0xff]
    %v136 = vld [vmem:[#allocation5 + $0x100] sm:$0xff]
    %v137 = vld [vmem:[#allocation5 + $0x108] sm:$0xff]
    %v138 = vld [vmem:[#allocation5 + $0x110] sm:$0xff]
    %v139 = vld [vmem:[#allocation5 + $0x118] sm:$0xff]
    %v140 = vld [vmem:[#allocation5 + $0x120] sm:$0xff]
    %v141 = vld [vmem:[#allocation5 + $0x128] sm:$0xff]
    %v142 = vld [vmem:[#allocation5 + $0x130] sm:$0xff]
    %v143 = vld [vmem:[#allocation5 + $0x138] sm:$0xff]
    %v144 = vld [vmem:[#allocation5 + $0x140] sm:$0xff]
    %v145 = vld [vmem:[#allocation5 + $0x148] sm:$0xff]
    %v146 = vld [vmem:[#allocation5 + $0x150] sm:$0xff]
    %v147 = vld [vmem:[#allocation5 + $0x158] sm:$0xff]
    %v148 = vld [vmem:[#allocation5 + $0x160] sm:$0xff]
    %v149 = vld [vmem:[#allocation5 + $0x168] sm:$0xff]
    %v150 = vld [vmem:[#allocation5 + $0x170] sm:$0xff]
    %v151 = vld [vmem:[#allocation5 + $0x178] sm:$0xff]
    %v152 = vld [vmem:[#allocation5 + $0x180] sm:$0xff]
    %v153 = vld [vmem:[#allocation5 + $0x188] sm:$0xff]
    %v154 = vld [vmem:[#allocation5 + $0x190] sm:$0xff]
    %v155 = vld [vmem:[#allocation5 + $0x198] sm:$0xff]
    %v156 = vld [vmem:[#allocation5 + $0x1a0] sm:$0xff]
    %v157 = vld [vmem:[#allocation5 + $0x1a8] sm:$0xff]
    %v158 = vld [vmem:[#allocation5 + $0x1b0] sm:$0xff]
    %v159 = vld [vmem:[#allocation5 + $0x1b8] sm:$0xff]
    %v160 = vld [vmem:[#allocation5 + $0x1c0] sm:$0xff]
    %v161 = vld [vmem:[#allocation5 + $0x1c8] sm:$0xff]
    %v162 = vld [vmem:[#allocation5 + $0x1d0] sm:$0xff]
    %v163 = vld [vmem:[#allocation5 + $0x1d8] sm:$0xff]
    %v164 = vld [vmem:[#allocation5 + $0x1e0] sm:$0xff]
    %v165 = vld [vmem:[#allocation5 + $0x1e8] sm:$0xff]
    %v166 = vld [vmem:[#allocation5 + $0x1f0] sm:$0xff]
    %v167 = vld [vmem:[#allocation5 + $0x1f8] sm:$0xff]
    %v168 = vld [vmem:[#allocation5 + $0x200] sm:$0xff]
    %v169 = vld [vmem:[#allocation5 + $0x208] sm:$0xff]
    %v170 = vld [vmem:[#allocation5 + $0x210] sm:$0xff]
    %v171 = vld [vmem:[#allocation5 + $0x218] sm:$0xff]
    %v172 = vld [vmem:[#allocation5 + $0x220] sm:$0xff]
    %v173 = vld [vmem:[#allocation5 + $0x228] sm:$0xff]
    %v174 = vld [vmem:[#allocation5 + $0x230] sm:$0xff]
    %v175 = vld [vmem:[#allocation5 + $0x238] sm:$0xff]
    %v176 = vld [vmem:[#allocation5 + $0x240] sm:$0xff]
    %v177 = vld [vmem:[#allocation5 + $0x248] sm:$0xff]
    %v178 = vld [vmem:[#allocation5 + $0x250] sm:$0xff]
    %v179 = vld [vmem:[#allocation5 + $0x258] sm:$0xff]
    %v180 = vld [vmem:[#allocation5 + $0x260] sm:$0xff]
    %v181 = vld [vmem:[#allocation5 + $0x268] sm:$0xff]
    %v182 = vld [vmem:[#allocation5 + $0x270] sm:$0xff]
    %v183 = vld [vmem:[#allocation5 + $0x278] sm:$0xff]
    %v184 = vld [vmem:[#allocation5 + $0x280] sm:$0xff]
    %v185 = vld [vmem:[#allocation5 + $0x288] sm:$0xff]
    %v186 = vld [vmem:[#allocation5 + $0x290] sm:$0xff]
    %v187 = vld [vmem:[#allocation5 + $0x298] sm:$0xff]
    %v188 = vld [vmem:[#allocation5 + $0x2a0] sm:$0xff]
    %v189 = vld [vmem:[#allocation5 + $0x2a8] sm:$0xff]
    %v190 = vld [vmem:[#allocation5 + $0x2b0] sm:$0xff]
    %v191 = vld [vmem:[#allocation5 + $0x2b8] sm:$0xff]
    %v192 = vld [vmem:[#allocation5 + $0x2c0] sm:$0xff]
    %v193 = vld [vmem:[#allocation5 + $0x2c8] sm:$0xff]
    %v194 = vld [vmem:[#allocation5 + $0x2d0] sm:$0xff]
    %v195 = vld [vmem:[#allocation5 + $0x2d8] sm:$0xff]
    %v196 = vld [vmem:[#allocation5 + $0x2e0] sm:$0xff]
    %v197 = vld [vmem:[#allocation5 + $0x2e8] sm:$0xff]
    %v198 = vld [vmem:[#allocation5 + $0x2f0] sm:$0xff]
    %v199 = vld [vmem:[#allocation5 + $0x2f8] sm:$0xff]
    %200 = vmatprep.subr.mxu0 %v105
    %201 = vmatpush1.xpose.msra.mxu0 %v104
    %202 = vmatprep.subr.mxu0 %v107
    %203 = vmatpush1.xpose.msra.mxu0 %v106
    %204 = vmatprep.subr.mxu0 %v109
    %205 = vmatpush1.xpose.msra.mxu0 %v108
    %206 = vmatprep.subr.mxu0 %v111
    %207 = vmatpush1.xpose.msra.mxu0 %v110
    %208 = vmatprep.subr.mxu0 %v113
    %209 = vmatpush1.xpose.msra.mxu0 %v112
    %210 = vmatprep.subr.mxu0 %v115
    %211 = vmatpush1.xpose.msra.mxu0 %v114
    %212 = vmatprep.subr.mxu0 %v117
    %213 = vmatpush1.xpose.msra.mxu0 %v116
    %214 = vmatprep.subr.mxu0 %v119
    %215 = vmatpush1.xpose.msra.mxu0 %v118
    %216 = vmatprep.subr.mxu0 %v121
    %217 = vmatpush1.xpose.msra.mxu0 %v120
    %218 = vmatprep.subr.mxu0 %v123
    %219 = vmatpush1.xpose.msra.mxu0 %v122
    %220 = vmatprep.subr.mxu0 %v125
    %221 = vmatpush1.xpose.msra.mxu0 %v124
    %222 = vmatprep.subr.mxu0 %v127
    %223 = vmatpush1.xpose.msra.mxu0 %v126
    %224 = vmatprep.subr.mxu0 %v129
    %225 = vmatpush1.xpose.msra.mxu0 %v128
    %226 = vmatprep.subr.mxu0 %v131
    %227 = vmatpush1.xpose.msra.mxu0 %v130
    %228 = vmatprep.subr.mxu0 %v133
    %229 = vmatpush1.xpose.msra.mxu0 %v132
    %230 = vmatprep.subr.mxu0 %v135
    %231 = vmatpush1.xpose.msra.mxu0 %v134
    %232 = vmatprep.subr.mxu0 %v137
    %233 = vmatpush1.xpose.msra.mxu0 %v136
    %234 = vmatprep.subr.mxu0 %v139
    %235 = vmatpush1.xpose.msra.mxu0 %v138
    %236 = vmatprep.subr.mxu0 %v141
    %237 = vmatpush1.xpose.msra.mxu0 %v140
    %238 = vmatprep.subr.mxu0 %v143
    %239 = vmatpush1.xpose.msra.mxu0 %v142
    %240 = vmatprep.subr.mxu0 %v145
    %241 = vmatpush1.xpose.msra.mxu0 %v144
    %242 = vmatprep.subr.mxu0 %v147
    %243 = vmatpush1.xpose.msra.mxu0 %v146
    %244 = vmatprep.subr.mxu0 %v149
    %245 = vmatpush1.xpose.msra.mxu0 %v148
    %246 = vmatprep.subr.mxu0 %v151
    %247 = vmatpush1.xpose.msra.mxu0 %v150
    %248 = vmatprep.subr.mxu0 %v153
    %249 = vmatpush1.xpose.msra.mxu0 %v152
    %250 = vmatprep.subr.mxu0 %v155
    %251 = vmatpush1.xpose.msra.mxu0 %v154
    %252 = vmatprep.subr.mxu0 %v157
    %253 = vmatpush1.xpose.msra.mxu0 %v156
    %254 = vmatprep.subr.mxu0 %v159
    %255 = vmatpush1.xpose.msra.mxu0 %v158
    %256 = vmatprep.subr.mxu0 %v161
    %257 = vmatpush1.xpose.msra.mxu0 %v160
    %258 = vmatprep.subr.mxu0 %v163
    %259 = vmatpush1.xpose.msra.mxu0 %v162
    %260 = vmatprep.subr.mxu0 %v165
    %261 = vmatpush1.xpose.msra.mxu0 %v164
    %262 = vmatprep.subr.mxu0 %v167
    %263 = vmatpush1.xpose.msra.mxu0 %v166
    %264 = vmatprep.mubr.f32.mxu0 %v102
    %265 = vmatmul.mubr.f32.gmra.mrb[0].mxu0 %v101
    %v266 = vpop.f32.mrb[0].mxu0
    %v267 = vadd.f32 0.0, %v266
    %v268 = vpop.f32.mrb[0].mxu0
    %v269 = vadd.f32 0.0, %v268
    %270 = vdwg.mxu0
    %271 = vmatprep.subr.mxu0 %v169
    %272 = vmatpush1.xpose.msra.mxu0 %v168
    %273 = vmatprep.subr.mxu0 %v171
    %274 = vmatpush1.xpose.msra.mxu0 %v170
    %275 = vmatprep.subr.mxu0 %v173
    %276 = vmatpush1.xpose.msra.mxu0 %v172
    %277 = vmatprep.subr.mxu0 %v175
    %278 = vmatpush1.xpose.msra.mxu0 %v174
    %279 = vmatprep.subr.mxu0 %v177
    %280 = vmatpush1.xpose.msra.mxu0 %v176
    %281 = vmatprep.subr.mxu0 %v179
    %282 = vmatpush1.xpose.msra.mxu0 %v178
    %283 = vmatprep.subr.mxu0 %v181
    %284 = vmatpush1.xpose.msra.mxu0 %v180
    %285 = vmatprep.subr.mxu0 %v183
    %286 = vmatpush1.xpose.msra.mxu0 %v182
    %287 = vmatprep.subr.mxu0 %v185
    %288 = vmatpush1.xpose.msra.mxu0 %v184
    %289 = vmatprep.subr.mxu0 %v187
    %290 = vmatpush1.xpose.msra.mxu0 %v186
    %291 = vmatprep.subr.mxu0 %v189
    %292 = vmatpush1.xpose.msra.mxu0 %v188
    %293 = vmatprep.subr.mxu0 %v191
    %294 = vmatpush1.xpose.msra.mxu0 %v190
    %295 = vmatprep.subr.mxu0 %v193
    %296 = vmatpush1.xpose.msra.mxu0 %v192
    %297 = vmatprep.subr.mxu0 %v195
    %298 = vmatpush1.xpose.msra.mxu0 %v194
    %299 = vmatprep.subr.mxu0 %v197
    %300 = vmatpush1.xpose.msra.mxu0 %v196
    %301 = vmatprep.subr.mxu0 %v199
    %302 = vmatpush1.xpose.msra.mxu0 %v198
    %303 = vmatprep.subr.mxu0 0.0
    %304 = vmatpush1.xpose.msra.mxu0 0.0
    %305 = vmatprep.subr.mxu0 0.0
    %306 = vmatpush1.xpose.msra.mxu0 0.0
    %307 = vmatprep.subr.mxu0 0.0
    %308 = vmatpush1.xpose.msra.mxu0 0.0
    %309 = vmatprep.subr.mxu0 0.0
    %310 = vmatpush1.xpose.msra.mxu0 0.0
    %311 = vmatprep.subr.mxu0 0.0
    %312 = vmatpush1.xpose.msra.mxu0 0.0
    %313 = vmatprep.subr.mxu0 0.0
    %314 = vmatpush1.xpose.msra.mxu0 0.0
    %315 = vmatprep.subr.mxu0 0.0
    %316 = vmatpush1.xpose.msra.mxu0 0.0
    %317 = vmatprep.subr.mxu0 0.0
    %318 = vmatpush1.xpose.msra.mxu0 0.0
    %319 = vmatprep.subr.mxu0 0.0
    %320 = vmatpush1.xpose.msra.mxu0 0.0
    %321 = vmatprep.subr.mxu0 0.0
    %322 = vmatpush1.xpose.msra.mxu0 0.0
    %323 = vmatprep.subr.mxu0 0.0
    %324 = vmatpush1.xpose.msra.mxu0 0.0
    %325 = vmatprep.subr.mxu0 0.0
    %326 = vmatpush1.xpose.msra.mxu0 0.0
    %327 = vmatprep.subr.mxu0 0.0
    %328 = vmatpush1.xpose.msra.mxu0 0.0
    %329 = vmatprep.subr.mxu0 0.0
    %330 = vmatpush1.xpose.msra.mxu0 0.0
    %331 = vmatprep.subr.mxu0 0.0
    %332 = vmatpush1.xpose.msra.mxu0 0.0
    %333 = vmatprep.subr.mxu0 0.0
    %334 = vmatpush1.xpose.msra.mxu0 0.0
    %335 = vmatprep.mubr.f32.mxu0 %v102
    %336 = vmatmul.mubr.f32.gmra.mrb[0].mxu0 %v101
    %v337 = vpop.f32.mrb[0].mxu0
    %v338 = vadd.f32 0.0, %v337
    %v339 = vpop.f32.mrb[0].mxu0
    %340 = vdwg.mxu0
    %v341 = vlaneseq
    %v342 = vand.u32 %v341, 127
    %v343 = vadd.s32 %v342, 128
    %v344 = vadd.s32 %v342, 256
    %s345 = smul.u32 %s95, 384
    %v346 = vstv %s345
    %v347 = vadd.s32 %v346, %v342
    %v348 = vadd.s32 %v346, %v343
    %v349 = vadd.s32 %v346, %v344
    %vm350 = vcmp.lt.s32.totalorder %v347, 320
    %vm351 = vcmp.lt.s32.totalorder %v348, 320
    %vm352 = vcmp.lt.s32.totalorder %v349, 320
    %v354 = vlaneseq
    %v355 = vshrl.u32 %v354, 7
    %v356 = vsub.s32 0, %v355
    %v357 = vrot.slane %v103, %v356
    %v358 = vlaneseq
    %v359 = vshrl.u32 %v358, 7
    %v360 = vsub.s32 2, %v359
    %v361 = vrot.slane %v103, %v360
    %v362 = vlaneseq
    %v363 = vshrl.u32 %v362, 7
    %v364 = vsub.s32 4, %v363
    %v365 = vrot.slane %v103, %v364
    %v369 = vadd.f32 %v267, %v357
    %v370 = vadd.f32 %v269, %v361
    %v371 = vadd.f32 %v338, %v365
    %v372 = vmax.f32 %v369, 0.0
    %v373 = vmax.f32 %v370, 0.0
    %v374 = vmax.f32 %v371, 0.0
    %v375 = vand.u32 2147483647, %v369
    %v376 = vand.u32 2147483647, %v370
    %v377 = vand.u32 2147483647, %v371
    %v378 = vsub.f32 0.0, %v375
    %v379 = vsub.f32 0.0, %v376
    %v380 = vsub.f32 0.0, %v377
    %v381 = vmul.f32 %v378, 1.442695
    %v382 = vpow.pop %v381
    %v383 = vmul.f32 %v379, 1.442695
    %v384 = vpow.pop %v383
    %v385 = vmul.f32 %v380, 1.442695
    %v386 = vpow.pop %v385
    %v387 = vadd.f32 %v382, 1.0
    %v388 = vlog2.pop %v387
    %v389 = vmul.f32 %v388, 0.6931472
    %v390 = vmul.f32 -0.5, %v382
    %v391 = vadd.f32 %v390, 1.0
    %v392 = vmul.f32 %v391, %v382
    %v393 = vand.u32 2147483647, %v382
    %vm394 = vcmp.lt.f32.partialorder %v393, 0.0004427343
    %v395 = vsel %vm394, %v392, %v389
    %v396 = vadd.f32 %v384, 1.0
    %v397 = vlog2.pop %v396
    %v398 = vmul.f32 %v397, 0.6931472
    %v399 = vmul.f32 -0.5, %v384
    %v400 = vadd.f32 %v399, 1.0
    %v401 = vmul.f32 %v400, %v384
    %v402 = vand.u32 2147483647, %v384
    %vm403 = vcmp.lt.f32.partialorder %v402, 0.0004427343
    %v404 = vsel %vm403, %v401, %v398
    %v405 = vadd.f32 %v386, 1.0
    %v406 = vlog2.pop %v405
    %v407 = vmul.f32 %v406, 0.6931472
    %v408 = vmul.f32 -0.5, %v386
    %v409 = vadd.f32 %v408, 1.0
    %v410 = vmul.f32 %v409, %v386
    %v411 = vand.u32 2147483647, %v386
    %vm412 = vcmp.lt.f32.partialorder %v411, 0.0004427343
    %v413 = vsel %vm412, %v410, %v407
    %v414 = vadd.f32 %v372, %v395
    %v415 = vadd.f32 %v373, %v404
    %v416 = vadd.f32 %v374, %v413
    %v417 = vsel %vm350, %v414, 0.0
    %v418 = vsel %vm351, %v415, 0.0
    %v419 = vsel %vm352, %v416, 0.0
    %vm420 = vcmask 1040384
    %v421 = vsel %vm420, %v417, 0.0
    %v422 = vsel %vm420, %v418, 0.0
    %v423 = vadd.f32 %v421, %v422
    %v424 = vsel %vm420, %v419, 0.0
    %v425 = vadd.f32 %v423, %v424
    %426 = vadd.xlane.f32.xlu0 %v425
    %v427 = vpop.xlane.xlu0 %426
    %v428 = vrot.slane %v427, 4
    %v429 = vadd.f32 %v427, %v428
    %v430 = vrot.slane %v429, 2
    %v431 = vadd.f32 %v429, %v430
    %v432 = vrot.slane %v431, 1
    %v433 = vadd.f32 %v431, %v432
    %s434 = vtos %v433
    %v435 = vstv %s434
    %v436 = vrot.slane %v103, 7
    %v437 = vrot.slane %v436, 2
    %v439 = vmul.f32 %v103, %v437
    %v441 = vlaneseq
    %v442 = vshrl.u32 %v441, 7
    %v443 = vsub.s32 0, %v442
    %v444 = vrot.slane %v439, %v443
    %v445 = vlaneseq
    %v446 = vshrl.u32 %v445, 7
    %v447 = vsub.s32 2, %v446
    %v448 = vrot.slane %v439, %v447
    %v449 = vlaneseq
    %v450 = vshrl.u32 %v449, 7
    %v451 = vsub.s32 4, %v450
    %v452 = vrot.slane %v439, %v451
    %v456 = vsel %vm350, %v444, 0.0
    %v457 = vsel %vm351, %v448, 0.0
    %v458 = vsel %vm352, %v452, 0.0
    %v459 = vsel %vm420, %v456, 0.0
    %v460 = vsel %vm420, %v457, 0.0
    %v461 = vadd.f32 %v459, %v460
    %v462 = vsel %vm420, %v458, 0.0
    %v463 = vadd.f32 %v461, %v462
    %464 = vadd.xlane.f32.xlu0 %v463
    %v465 = vpop.xlane.xlu0 %464
    %v466 = vrot.slane %v465, 4
    %v467 = vadd.f32 %v465, %v466
    %v468 = vrot.slane %v467, 2
    %v469 = vadd.f32 %v467, %v468
    %v470 = vrot.slane %v469, 1
    %v471 = vadd.f32 %v469, %v470
    %s472 = vtos %v471
    %v473 = vstv %s472
    %v477 = vcombine.low %v267, %v269
    %v479 = vunpack.c.l.s4 1983009808
    %v480 = vunpack.c.0.s8 %v479
    %v481 = vlaneseq
    %v482 = vshrl.u32 %v481, 7
    %v483 = vsub.s32 %v480, %v482
    %v484 = vrot.slane %v477, %v483
    %v486 = vunpack.c.l.s4 1983009808
    %v487 = vunpack.c.0.s8 %v486
    %v488 = vlaneseq
    %v489 = vshrl.u32 %v488, 7
    %v490 = vsub.s32 %v487, %v489
    %v491 = vrot.slane %v338, %v490
    %v492 = vcombine.low %v484, %v491
    %v494 = vmul.f32 %v103, %v492
    %v496 = vlaneseq
    %v497 = vshrl.u32 %v496, 7
    %v498 = vsub.s32 1, %v497
    %v499 = vrot.slane %v494, %v498
    %v500 = vlaneseq
    %v501 = vshrl.u32 %v500, 7
    %v502 = vsub.s32 3, %v501
    %v503 = vrot.slane %v494, %v502
    %v504 = vlaneseq
    %v505 = vshrl.u32 %v504, 7
    %v506 = vsub.s32 5, %v505
    %v507 = vrot.slane %v494, %v506
    %v511 = vsel %vm350, %v499, 0.0
    %v512 = vsel %vm351, %v503, 0.0
    %v513 = vsel %vm352, %v507, 0.0
    %v514 = vsel %vm420, %v511, 0.0
    %v515 = vsel %vm420, %v512, 0.0
    %v516 = vadd.f32 %v514, %v515
    %v517 = vsel %vm420, %v513, 0.0
    %v518 = vadd.f32 %v516, %v517
    %519 = vadd.xlane.f32.xlu0 %v518
    %v520 = vpop.xlane.xlu0 %519
    %v521 = vrot.slane %v520, 4
    %v522 = vadd.f32 %v520, %v521
    %v523 = vrot.slane %v522, 2
    %v524 = vadd.f32 %v522, %v523
    %v525 = vrot.slane %v524, 1
    %v526 = vadd.f32 %v524, %v525
    %s527 = vtos %v526
    %v528 = vstv %s527
    %v529 = vmul.f32 %v103, %v103
    %v531 = vlaneseq
    %v532 = vshrl.u32 %v531, 7
    %v533 = vsub.s32 0, %v532
    %v534 = vrot.slane %v529, %v533
    %v535 = vlaneseq
    %v536 = vshrl.u32 %v535, 7
    %v537 = vsub.s32 2, %v536
    %v538 = vrot.slane %v529, %v537
    %v539 = vlaneseq
    %v540 = vshrl.u32 %v539, 7
    %v541 = vsub.s32 4, %v540
    %v542 = vrot.slane %v529, %v541
    %v546 = vsel %vm350, %v534, 0.0
    %v547 = vsel %vm351, %v538, 0.0
    %v548 = vsel %vm352, %v542, 0.0
    %v549 = vsel %vm420, %v546, 0.0
    %v550 = vsel %vm420, %v547, 0.0
    %v551 = vadd.f32 %v549, %v550
    %v552 = vsel %vm420, %v548, 0.0
    %v553 = vadd.f32 %v551, %v552
    %554 = vadd.xlane.f32.xlu0 %v553
    %v555 = vpop.xlane.xlu0 %554
    %v556 = vrot.slane %v555, 4
    %v557 = vadd.f32 %v555, %v556
    %v558 = vrot.slane %v557, 2
    %v559 = vadd.f32 %v557, %v558
    %v560 = vrot.slane %v559, 1
    %v561 = vadd.f32 %v559, %v560
    %s562 = vtos %v561
    %v563 = vstv %s562
    %s564 = smul.u32 0, 2
    %s565 = smul.addr %s564, 8
    %s566 = scalar_lea.vmem [#allocation5], %s565
    %v567 = vld [vmem:[%s566] sm:$0xff]
    %v568 = vld [vmem:[%s566 + $0x8] sm:$0xff]
    %v569 = vld [vmem:[%s566 + $0x10] sm:$0xff]
    %v570 = vld [vmem:[%s566 + $0x18] sm:$0xff]
    %v571 = vld [vmem:[%s566 + $0x20] sm:$0xff]
    %v572 = vld [vmem:[%s566 + $0x28] sm:$0xff]
    %v573 = vld [vmem:[%s566 + $0x30] sm:$0xff]
    %v574 = vld [vmem:[%s566 + $0x38] sm:$0xff]
    %v575 = vld [vmem:[%s566 + $0x40] sm:$0xff]
    %v576 = vld [vmem:[%s566 + $0x48] sm:$0xff]
    %v577 = vld [vmem:[%s566 + $0x50] sm:$0xff]
    %v578 = vld [vmem:[%s566 + $0x58] sm:$0xff]
    %v579 = vld [vmem:[%s566 + $0x60] sm:$0xff]
    %v580 = vld [vmem:[%s566 + $0x68] sm:$0xff]
    %v581 = vld [vmem:[%s566 + $0x70] sm:$0xff]
    %v582 = vld [vmem:[%s566 + $0x78] sm:$0xff]
    %v583 = vld [vmem:[%s566 + $0x80] sm:$0xff]
    %v584 = vld [vmem:[%s566 + $0x88] sm:$0xff]
    %v585 = vld [vmem:[%s566 + $0x90] sm:$0xff]
    %v586 = vld [vmem:[%s566 + $0x98] sm:$0xff]
    %v587 = vld [vmem:[%s566 + $0xa0] sm:$0xff]
    %v588 = vld [vmem:[%s566 + $0xa8] sm:$0xff]
    %v589 = vld [vmem:[%s566 + $0xb0] sm:$0xff]
    %v590 = vld [vmem:[%s566 + $0xb8] sm:$0xff]
    %v591 = vld [vmem:[%s566 + $0xc0] sm:$0xff]
    %v592 = vld [vmem:[%s566 + $0xc8] sm:$0xff]
    %v593 = vld [vmem:[%s566 + $0xd0] sm:$0xff]
    %v594 = vld [vmem:[%s566 + $0xd8] sm:$0xff]
    %v595 = vld [vmem:[%s566 + $0xe0] sm:$0xff]
    %v596 = vld [vmem:[%s566 + $0xe8] sm:$0xff]
    %v597 = vld [vmem:[%s566 + $0xf0] sm:$0xff]
    %v598 = vld [vmem:[%s566 + $0xf8] sm:$0xff]
    %s599 = sadd.s32 %s345, 0
    %v600 = vlaneseq
    %v601 = vshrl.u32 %v600, 7
    %v602 = vadd.s32 %v601, 8
    %v603 = vadd.s32 %v601, 16
    %v604 = vadd.s32 %v601, 24
    %v605 = vadd.s32 %v601, 32
    %v606 = vadd.s32 %v601, 40
    %v607 = vadd.s32 %v601, 48
    %v608 = vadd.s32 %v601, 56
    %v609 = vadd.s32 %v601, 64
    %v610 = vadd.s32 %v601, 72
    %v611 = vadd.s32 %v601, 80
    %v612 = vadd.s32 %v601, 88
    %v613 = vadd.s32 %v601, 96
    %v614 = vadd.s32 %v601, 104
    %v615 = vadd.s32 %v601, 112
    %v616 = vadd.s32 %v601, 120
    %v617 = vstv %s599
    %v618 = vadd.s32 %v617, %v601
    %v619 = vadd.s32 %v617, %v602
    %v620 = vadd.s32 %v617, %v603
    %v621 = vadd.s32 %v617, %v604
    %v622 = vadd.s32 %v617, %v605
    %v623 = vadd.s32 %v617, %v606
    %v624 = vadd.s32 %v617, %v607
    %v625 = vadd.s32 %v617, %v608
    %v626 = vadd.s32 %v617, %v609
    %v627 = vadd.s32 %v617, %v610
    %v628 = vadd.s32 %v617, %v611
    %v629 = vadd.s32 %v617, %v612
    %v630 = vadd.s32 %v617, %v613
    %v631 = vadd.s32 %v617, %v614
    %v632 = vadd.s32 %v617, %v615
    %v633 = vadd.s32 %v617, %v616
    %vm634 = vcmp.lt.s32.totalorder %v618, 320
    %vm635 = vcmp.lt.s32.totalorder %v619, 320
    %vm636 = vcmp.lt.s32.totalorder %v620, 320
    %vm637 = vcmp.lt.s32.totalorder %v621, 320
    %vm638 = vcmp.lt.s32.totalorder %v622, 320
    %vm639 = vcmp.lt.s32.totalorder %v623, 320
    %vm640 = vcmp.lt.s32.totalorder %v624, 320
    %vm641 = vcmp.lt.s32.totalorder %v625, 320
    %vm642 = vcmp.lt.s32.totalorder %v626, 320
    %vm643 = vcmp.lt.s32.totalorder %v627, 320
    %vm644 = vcmp.lt.s32.totalorder %v628, 320
    %vm645 = vcmp.lt.s32.totalorder %v629, 320
    %vm646 = vcmp.lt.s32.totalorder %v630, 320
    %vm647 = vcmp.lt.s32.totalorder %v631, 320
    %vm648 = vcmp.lt.s32.totalorder %v632, 320
    %vm649 = vcmp.lt.s32.totalorder %v633, 320
    %v650 = vsel %vm634, 1, 0
    %v651 = vsel %vm635, 1, 0
    %v652 = vsel %vm636, 1, 0
    %v653 = vsel %vm637, 1, 0
    %v654 = vsel %vm638, 1, 0
    %v655 = vsel %vm639, 1, 0
    %v656 = vsel %vm640, 1, 0
    %v657 = vsel %vm641, 1, 0
    %v658 = vsel %vm642, 1, 0
    %v659 = vsel %vm643, 1, 0
    %v660 = vsel %vm644, 1, 0
    %v661 = vsel %vm645, 1, 0
    %v662 = vsel %vm646, 1, 0
    %v663 = vsel %vm647, 1, 0
    %v664 = vsel %vm648, 1, 0
    %v665 = vsel %vm649, 1, 0
    %vm666 = vcmp.eq.s32.totalorder %v650, 1
    %vm667 = vcmp.eq.s32.totalorder %v651, 1
    %vm668 = vcmp.eq.s32.totalorder %v652, 1
    %vm669 = vcmp.eq.s32.totalorder %v653, 1
    %vm670 = vcmp.eq.s32.totalorder %v654, 1
    %vm671 = vcmp.eq.s32.totalorder %v655, 1
    %vm672 = vcmp.eq.s32.totalorder %v656, 1
    %vm673 = vcmp.eq.s32.totalorder %v657, 1
    %vm674 = vcmp.eq.s32.totalorder %v658, 1
    %vm675 = vcmp.eq.s32.totalorder %v659, 1
    %vm676 = vcmp.eq.s32.totalorder %v660, 1
    %vm677 = vcmp.eq.s32.totalorder %v661, 1
    %vm678 = vcmp.eq.s32.totalorder %v662, 1
    %vm679 = vcmp.eq.s32.totalorder %v663, 1
    %vm680 = vcmp.eq.s32.totalorder %v664, 1
    %vm681 = vcmp.eq.s32.totalorder %v665, 1
    %v682 = vsel %vm666, %v567, 0.0
    %v683 = vsel %vm666, %v568, 0.0
    %v684 = vsel %vm667, %v569, 0.0
    %v685 = vsel %vm667, %v570, 0.0
    %v686 = vsel %vm668, %v571, 0.0
    %v687 = vsel %vm668, %v572, 0.0
    %v688 = vsel %vm669, %v573, 0.0
    %v689 = vsel %vm669, %v574, 0.0
    %v690 = vsel %vm670, %v575, 0.0
    %v691 = vsel %vm670, %v576, 0.0
    %v692 = vsel %vm671, %v577, 0.0
    %v693 = vsel %vm671, %v578, 0.0
    %v694 = vsel %vm672, %v579, 0.0
    %v695 = vsel %vm672, %v580, 0.0
    %v696 = vsel %vm673, %v581, 0.0
    %v697 = vsel %vm673, %v582, 0.0
    %v698 = vsel %vm674, %v583, 0.0
    %v699 = vsel %vm674, %v584, 0.0
    %v700 = vsel %vm675, %v585, 0.0
    %v701 = vsel %vm675, %v586, 0.0
    %v702 = vsel %vm676, %v587, 0.0
    %v703 = vsel %vm676, %v588, 0.0
    %v704 = vsel %vm677, %v589, 0.0
    %v705 = vsel %vm677, %v590, 0.0
    %v706 = vsel %vm678, %v591, 0.0
    %v707 = vsel %vm678, %v592, 0.0
    %v708 = vsel %vm679, %v593, 0.0
    %v709 = vsel %vm679, %v594, 0.0
    %v710 = vsel %vm680, %v595, 0.0
    %v711 = vsel %vm680, %v596, 0.0
    %v712 = vsel %vm681, %v597, 0.0
    %v713 = vsel %vm681, %v598, 0.0
    %v714 = vmul.f32 %v682, %v682
    %v715 = vmul.f32 %v683, %v683
    %v716 = vmul.f32 %v684, %v684
    %v717 = vmul.f32 %v685, %v685
    %v718 = vmul.f32 %v686, %v686
    %v719 = vmul.f32 %v687, %v687
    %v720 = vmul.f32 %v688, %v688
    %v721 = vmul.f32 %v689, %v689
    %v722 = vmul.f32 %v690, %v690
    %v723 = vmul.f32 %v691, %v691
    %v724 = vmul.f32 %v692, %v692
    %v725 = vmul.f32 %v693, %v693
    %v726 = vmul.f32 %v694, %v694
    %v727 = vmul.f32 %v695, %v695
    %v728 = vmul.f32 %v696, %v696
    %v729 = vmul.f32 %v697, %v697
    %v730 = vmul.f32 %v698, %v698
    %v731 = vmul.f32 %v699, %v699
    %v732 = vmul.f32 %v700, %v700
    %v733 = vmul.f32 %v701, %v701
    %v734 = vmul.f32 %v702, %v702
    %v735 = vmul.f32 %v703, %v703
    %v736 = vmul.f32 %v704, %v704
    %v737 = vmul.f32 %v705, %v705
    %v738 = vmul.f32 %v706, %v706
    %v739 = vmul.f32 %v707, %v707
    %v740 = vmul.f32 %v708, %v708
    %v741 = vmul.f32 %v709, %v709
    %v742 = vmul.f32 %v710, %v710
    %v743 = vmul.f32 %v711, %v711
    %v744 = vmul.f32 %v712, %v712
    %v745 = vmul.f32 %v713, %v713
    %v746 = vadd.f32 %v714, %v715
    %v747 = vadd.f32 %v746, %v716
    %v748 = vadd.f32 %v747, %v717
    %v749 = vadd.f32 %v748, %v718
    %v750 = vadd.f32 %v749, %v719
    %v751 = vadd.f32 %v750, %v720
    %v752 = vadd.f32 %v751, %v721
    %v753 = vadd.f32 %v752, %v722
    %v754 = vadd.f32 %v753, %v723
    %v755 = vadd.f32 %v754, %v724
    %v756 = vadd.f32 %v755, %v725
    %v757 = vadd.f32 %v756, %v726
    %v758 = vadd.f32 %v757, %v727
    %v759 = vadd.f32 %v758, %v728
    %v760 = vadd.f32 %v759, %v729
    %v761 = vadd.f32 %v760, %v730
    %v762 = vadd.f32 %v761, %v731
    %v763 = vadd.f32 %v762, %v732
    %v764 = vadd.f32 %v763, %v733
    %v765 = vadd.f32 %v764, %v734
    %v766 = vadd.f32 %v765, %v735
    %v767 = vadd.f32 %v766, %v736
    %v768 = vadd.f32 %v767, %v737
    %v769 = vadd.f32 %v768, %v738
    %v770 = vadd.f32 %v769, %v739
    %v771 = vadd.f32 %v770, %v740
    %v772 = vadd.f32 %v771, %v741
    %v773 = vadd.f32 %v772, %v742
    %v774 = vadd.f32 %v773, %v743
    %v775 = vadd.f32 %v774, %v744
    %v776 = vadd.f32 %v775, %v745
    %777 = vadd.xlane.f32.xlu0 %v776
    %v778 = vpop.xlane.xlu0 %777
    %v779 = vrot.slane %v778, 4
    %v780 = vadd.f32 %v778, %v779
    %v781 = vrot.slane %v780, 2
    %v782 = vadd.f32 %v780, %v781
    %v783 = vrot.slane %v782, 1
    %v784 = vadd.f32 %v782, %v783
    %s785 = vtos %v784
    %v786 = vstv %s785
    %v787 = vadd.f32 %v786, 0.0
    %s788 = smul.u32 16, 2
    %s789 = smul.addr %s788, 8
    %s790 = scalar_lea.vmem [#allocation5], %s789
    %v791 = vld [vmem:[%s790] sm:$0xff]
    %v792 = vld [vmem:[%s790 + $0x8] sm:$0xff]
    %v793 = vld [vmem:[%s790 + $0x10] sm:$0xff]
    %v794 = vld [vmem:[%s790 + $0x18] sm:$0xff]
    %v795 = vld [vmem:[%s790 + $0x20] sm:$0xff]
    %v796 = vld [vmem:[%s790 + $0x28] sm:$0xff]
    %v797 = vld [vmem:[%s790 + $0x30] sm:$0xff]
    %v798 = vld [vmem:[%s790 + $0x38] sm:$0xff]
    %v799 = vld [vmem:[%s790 + $0x40] sm:$0xff]
    %v800 = vld [vmem:[%s790 + $0x48] sm:$0xff]
    %v801 = vld [vmem:[%s790 + $0x50] sm:$0xff]
    %v802 = vld [vmem:[%s790 + $0x58] sm:$0xff]
    %v803 = vld [vmem:[%s790 + $0x60] sm:$0xff]
    %v804 = vld [vmem:[%s790 + $0x68] sm:$0xff]
    %v805 = vld [vmem:[%s790 + $0x70] sm:$0xff]
    %v806 = vld [vmem:[%s790 + $0x78] sm:$0xff]
    %v807 = vld [vmem:[%s790 + $0x80] sm:$0xff]
    %v808 = vld [vmem:[%s790 + $0x88] sm:$0xff]
    %v809 = vld [vmem:[%s790 + $0x90] sm:$0xff]
    %v810 = vld [vmem:[%s790 + $0x98] sm:$0xff]
    %v811 = vld [vmem:[%s790 + $0xa0] sm:$0xff]
    %v812 = vld [vmem:[%s790 + $0xa8] sm:$0xff]
    %v813 = vld [vmem:[%s790 + $0xb0] sm:$0xff]
    %v814 = vld [vmem:[%s790 + $0xb8] sm:$0xff]
    %v815 = vld [vmem:[%s790 + $0xc0] sm:$0xff]
    %v816 = vld [vmem:[%s790 + $0xc8] sm:$0xff]
    %v817 = vld [vmem:[%s790 + $0xd0] sm:$0xff]
    %v818 = vld [vmem:[%s790 + $0xd8] sm:$0xff]
    %v819 = vld [vmem:[%s790 + $0xe0] sm:$0xff]
    %v820 = vld [vmem:[%s790 + $0xe8] sm:$0xff]
    %v821 = vld [vmem:[%s790 + $0xf0] sm:$0xff]
    %v822 = vld [vmem:[%s790 + $0xf8] sm:$0xff]
    %s823 = sadd.s32 %s345, 128
    %v824 = vstv %s823
    %v825 = vadd.s32 %v824, %v601
    %v826 = vadd.s32 %v824, %v602
    %v827 = vadd.s32 %v824, %v603
    %v828 = vadd.s32 %v824, %v604
    %v829 = vadd.s32 %v824, %v605
    %v830 = vadd.s32 %v824, %v606
    %v831 = vadd.s32 %v824, %v607
    %v832 = vadd.s32 %v824, %v608
    %v833 = vadd.s32 %v824, %v609
    %v834 = vadd.s32 %v824, %v610
    %v835 = vadd.s32 %v824, %v611
    %v836 = vadd.s32 %v824, %v612
    %v837 = vadd.s32 %v824, %v613
    %v838 = vadd.s32 %v824, %v614
    %v839 = vadd.s32 %v824, %v615
    %v840 = vadd.s32 %v824, %v616
    %vm841 = vcmp.lt.s32.totalorder %v825, 320
    %vm842 = vcmp.lt.s32.totalorder %v826, 320
    %vm843 = vcmp.lt.s32.totalorder %v827, 320
    %vm844 = vcmp.lt.s32.totalorder %v828, 320
    %vm845 = vcmp.lt.s32.totalorder %v829, 320
    %vm846 = vcmp.lt.s32.totalorder %v830, 320
    %vm847 = vcmp.lt.s32.totalorder %v831, 320
    %vm848 = vcmp.lt.s32.totalorder %v832, 320
    %vm849 = vcmp.lt.s32.totalorder %v833, 320
    %vm850 = vcmp.lt.s32.totalorder %v834, 320
    %vm851 = vcmp.lt.s32.totalorder %v835, 320
    %vm852 = vcmp.lt.s32.totalorder %v836, 320
    %vm853 = vcmp.lt.s32.totalorder %v837, 320
    %vm854 = vcmp.lt.s32.totalorder %v838, 320
    %vm855 = vcmp.lt.s32.totalorder %v839, 320
    %vm856 = vcmp.lt.s32.totalorder %v840, 320
    %v857 = vsel %vm841, 1, 0
    %v858 = vsel %vm842, 1, 0
    %v859 = vsel %vm843, 1, 0
    %v860 = vsel %vm844, 1, 0
    %v861 = vsel %vm845, 1, 0
    %v862 = vsel %vm846, 1, 0
    %v863 = vsel %vm847, 1, 0
    %v864 = vsel %vm848, 1, 0
    %v865 = vsel %vm849, 1, 0
    %v866 = vsel %vm850, 1, 0
    %v867 = vsel %vm851, 1, 0
    %v868 = vsel %vm852, 1, 0
    %v869 = vsel %vm853, 1, 0
    %v870 = vsel %vm854, 1, 0
    %v871 = vsel %vm855, 1, 0
    %v872 = vsel %vm856, 1, 0
    %vm873 = vcmp.eq.s32.totalorder %v857, 1
    %vm874 = vcmp.eq.s32.totalorder %v858, 1
    %vm875 = vcmp.eq.s32.totalorder %v859, 1
    %vm876 = vcmp.eq.s32.totalorder %v860, 1
    %vm877 = vcmp.eq.s32.totalorder %v861, 1
    %vm878 = vcmp.eq.s32.totalorder %v862, 1
    %vm879 = vcmp.eq.s32.totalorder %v863, 1
    %vm880 = vcmp.eq.s32.totalorder %v864, 1
    %vm881 = vcmp.eq.s32.totalorder %v865, 1
    %vm882 = vcmp.eq.s32.totalorder %v866, 1
    %vm883 = vcmp.eq.s32.totalorder %v867, 1
    %vm884 = vcmp.eq.s32.totalorder %v868, 1
    %vm885 = vcmp.eq.s32.totalorder %v869, 1
    %vm886 = vcmp.eq.s32.totalorder %v870, 1
    %vm887 = vcmp.eq.s32.totalorder %v871, 1
    %vm888 = vcmp.eq.s32.totalorder %v872, 1
    %v889 = vsel %vm873, %v791, 0.0
    %v890 = vsel %vm873, %v792, 0.0
    %v891 = vsel %vm874, %v793, 0.0
    %v892 = vsel %vm874, %v794, 0.0
    %v893 = vsel %vm875, %v795, 0.0
    %v894 = vsel %vm875, %v796, 0.0
    %v895 = vsel %vm876, %v797, 0.0
    %v896 = vsel %vm876, %v798, 0.0
    %v897 = vsel %vm877, %v799, 0.0
    %v898 = vsel %vm877, %v800, 0.0
    %v899 = vsel %vm878, %v801, 0.0
    %v900 = vsel %vm878, %v802, 0.0
    %v901 = vsel %vm879, %v803, 0.0
    %v902 = vsel %vm879, %v804, 0.0
    %v903 = vsel %vm880, %v805, 0.0
    %v904 = vsel %vm880, %v806, 0.0
    %v905 = vsel %vm881, %v807, 0.0
    %v906 = vsel %vm881, %v808, 0.0
    %v907 = vsel %vm882, %v809, 0.0
    %v908 = vsel %vm882, %v810, 0.0
    %v909 = vsel %vm883, %v811, 0.0
    %v910 = vsel %vm883, %v812, 0.0
    %v911 = vsel %vm884, %v813, 0.0
    %v912 = vsel %vm884, %v814, 0.0
    %v913 = vsel %vm885, %v815, 0.0
    %v914 = vsel %vm885, %v816, 0.0
    %v915 = vsel %vm886, %v817, 0.0
    %v916 = vsel %vm886, %v818, 0.0
    %v917 = vsel %vm887, %v819, 0.0
    %v918 = vsel %vm887, %v820, 0.0
    %v919 = vsel %vm888, %v821, 0.0
    %v920 = vsel %vm888, %v822, 0.0
    %v921 = vmul.f32 %v889, %v889
    %v922 = vmul.f32 %v890, %v890
    %v923 = vmul.f32 %v891, %v891
    %v924 = vmul.f32 %v892, %v892
    %v925 = vmul.f32 %v893, %v893
    %v926 = vmul.f32 %v894, %v894
    %v927 = vmul.f32 %v895, %v895
    %v928 = vmul.f32 %v896, %v896
    %v929 = vmul.f32 %v897, %v897
    %v930 = vmul.f32 %v898, %v898
    %v931 = vmul.f32 %v899, %v899
    %v932 = vmul.f32 %v900, %v900
    %v933 = vmul.f32 %v901, %v901
    %v934 = vmul.f32 %v902, %v902
    %v935 = vmul.f32 %v903, %v903
    %v936 = vmul.f32 %v904, %v904
    %v937 = vmul.f32 %v905, %v905
    %v938 = vmul.f32 %v906, %v906
    %v939 = vmul.f32 %v907, %v907
    %v940 = vmul.f32 %v908, %v908
    %v941 = vmul.f32 %v909, %v909
    %v942 = vmul.f32 %v910, %v910
    %v943 = vmul.f32 %v911, %v911
    %v944 = vmul.f32 %v912, %v912
    %v945 = vmul.f32 %v913, %v913
    %v946 = vmul.f32 %v914, %v914
    %v947 = vmul.f32 %v915, %v915
    %v948 = vmul.f32 %v916, %v916
    %v949 = vmul.f32 %v917, %v917
    %v950 = vmul.f32 %v918, %v918
    %v951 = vmul.f32 %v919, %v919
    %v952 = vmul.f32 %v920, %v920
    %v953 = vadd.f32 %v921, %v922
    %v954 = vadd.f32 %v953, %v923
    %v955 = vadd.f32 %v954, %v924
    %v956 = vadd.f32 %v955, %v925
    %v957 = vadd.f32 %v956, %v926
    %v958 = vadd.f32 %v957, %v927
    %v959 = vadd.f32 %v958, %v928
    %v960 = vadd.f32 %v959, %v929
    %v961 = vadd.f32 %v960, %v930
    %v962 = vadd.f32 %v961, %v931
    %v963 = vadd.f32 %v962, %v932
    %v964 = vadd.f32 %v963, %v933
    %v965 = vadd.f32 %v964, %v934
    %v966 = vadd.f32 %v965, %v935
    %v967 = vadd.f32 %v966, %v936
    %v968 = vadd.f32 %v967, %v937
    %v969 = vadd.f32 %v968, %v938
    %v970 = vadd.f32 %v969, %v939
    %v971 = vadd.f32 %v970, %v940
    %v972 = vadd.f32 %v971, %v941
    %v973 = vadd.f32 %v972, %v942
    %v974 = vadd.f32 %v973, %v943
    %v975 = vadd.f32 %v974, %v944
    %v976 = vadd.f32 %v975, %v945
    %v977 = vadd.f32 %v976, %v946
    %v978 = vadd.f32 %v977, %v947
    %v979 = vadd.f32 %v978, %v948
    %v980 = vadd.f32 %v979, %v949
    %v981 = vadd.f32 %v980, %v950
    %v982 = vadd.f32 %v981, %v951
    %v983 = vadd.f32 %v982, %v952
    %984 = vadd.xlane.f32.xlu0 %v983
    %v985 = vpop.xlane.xlu0 %984
    %v986 = vrot.slane %v985, 4
    %v987 = vadd.f32 %v985, %v986
    %v988 = vrot.slane %v987, 2
    %v989 = vadd.f32 %v987, %v988
    %v990 = vrot.slane %v989, 1
    %v991 = vadd.f32 %v989, %v990
    %s992 = vtos %v991
    %v993 = vstv %s992
    %v994 = vadd.f32 %v787, %v993
    %s995 = smul.u32 32, 2
    %s996 = smul.addr %s995, 8
    %s997 = scalar_lea.vmem [#allocation5], %s996
    %v998 = vld [vmem:[%s997] sm:$0xff]
    %v999 = vld [vmem:[%s997 + $0x8] sm:$0xff]
    %v1000 = vld [vmem:[%s997 + $0x10] sm:$0xff]
    %v1001 = vld [vmem:[%s997 + $0x18] sm:$0xff]
    %v1002 = vld [vmem:[%s997 + $0x20] sm:$0xff]
    %v1003 = vld [vmem:[%s997 + $0x28] sm:$0xff]
    %v1004 = vld [vmem:[%s997 + $0x30] sm:$0xff]
    %v1005 = vld [vmem:[%s997 + $0x38] sm:$0xff]
    %v1006 = vld [vmem:[%s997 + $0x40] sm:$0xff]
    %v1007 = vld [vmem:[%s997 + $0x48] sm:$0xff]
    %v1008 = vld [vmem:[%s997 + $0x50] sm:$0xff]
    %v1009 = vld [vmem:[%s997 + $0x58] sm:$0xff]
    %v1010 = vld [vmem:[%s997 + $0x60] sm:$0xff]
    %v1011 = vld [vmem:[%s997 + $0x68] sm:$0xff]
    %v1012 = vld [vmem:[%s997 + $0x70] sm:$0xff]
    %v1013 = vld [vmem:[%s997 + $0x78] sm:$0xff]
    %v1014 = vld [vmem:[%s997 + $0x80] sm:$0xff]
    %v1015 = vld [vmem:[%s997 + $0x88] sm:$0xff]
    %v1016 = vld [vmem:[%s997 + $0x90] sm:$0xff]
    %v1017 = vld [vmem:[%s997 + $0x98] sm:$0xff]
    %v1018 = vld [vmem:[%s997 + $0xa0] sm:$0xff]
    %v1019 = vld [vmem:[%s997 + $0xa8] sm:$0xff]
    %v1020 = vld [vmem:[%s997 + $0xb0] sm:$0xff]
    %v1021 = vld [vmem:[%s997 + $0xb8] sm:$0xff]
    %v1022 = vld [vmem:[%s997 + $0xc0] sm:$0xff]
    %v1023 = vld [vmem:[%s997 + $0xc8] sm:$0xff]
    %v1024 = vld [vmem:[%s997 + $0xd0] sm:$0xff]
    %v1025 = vld [vmem:[%s997 + $0xd8] sm:$0xff]
    %v1026 = vld [vmem:[%s997 + $0xe0] sm:$0xff]
    %v1027 = vld [vmem:[%s997 + $0xe8] sm:$0xff]
    %v1028 = vld [vmem:[%s997 + $0xf0] sm:$0xff]
    %v1029 = vld [vmem:[%s997 + $0xf8] sm:$0xff]
    %s1030 = sadd.s32 %s345, 256
    %v1031 = vstv %s1030
    %v1032 = vadd.s32 %v1031, %v601
    %v1033 = vadd.s32 %v1031, %v602
    %v1034 = vadd.s32 %v1031, %v603
    %v1035 = vadd.s32 %v1031, %v604
    %v1036 = vadd.s32 %v1031, %v605
    %v1037 = vadd.s32 %v1031, %v606
    %v1038 = vadd.s32 %v1031, %v607
    %v1039 = vadd.s32 %v1031, %v608
    %v1040 = vadd.s32 %v1031, %v609
    %v1041 = vadd.s32 %v1031, %v610
    %v1042 = vadd.s32 %v1031, %v611
    %v1043 = vadd.s32 %v1031, %v612
    %v1044 = vadd.s32 %v1031, %v613
    %v1045 = vadd.s32 %v1031, %v614
    %v1046 = vadd.s32 %v1031, %v615
    %v1047 = vadd.s32 %v1031, %v616
    %vm1048 = vcmp.lt.s32.totalorder %v1032, 320
    %vm1049 = vcmp.lt.s32.totalorder %v1033, 320
    %vm1050 = vcmp.lt.s32.totalorder %v1034, 320
    %vm1051 = vcmp.lt.s32.totalorder %v1035, 320
    %vm1052 = vcmp.lt.s32.totalorder %v1036, 320
    %vm1053 = vcmp.lt.s32.totalorder %v1037, 320
    %vm1054 = vcmp.lt.s32.totalorder %v1038, 320
    %vm1055 = vcmp.lt.s32.totalorder %v1039, 320
    %vm1056 = vcmp.lt.s32.totalorder %v1040, 320
    %vm1057 = vcmp.lt.s32.totalorder %v1041, 320
    %vm1058 = vcmp.lt.s32.totalorder %v1042, 320
    %vm1059 = vcmp.lt.s32.totalorder %v1043, 320
    %vm1060 = vcmp.lt.s32.totalorder %v1044, 320
    %vm1061 = vcmp.lt.s32.totalorder %v1045, 320
    %vm1062 = vcmp.lt.s32.totalorder %v1046, 320
    %vm1063 = vcmp.lt.s32.totalorder %v1047, 320
    %v1064 = vsel %vm1048, 1, 0
    %v1065 = vsel %vm1049, 1, 0
    %v1066 = vsel %vm1050, 1, 0
    %v1067 = vsel %vm1051, 1, 0
    %v1068 = vsel %vm1052, 1, 0
    %v1069 = vsel %vm1053, 1, 0
    %v1070 = vsel %vm1054, 1, 0
    %v1071 = vsel %vm1055, 1, 0
    %v1072 = vsel %vm1056, 1, 0
    %v1073 = vsel %vm1057, 1, 0
    %v1074 = vsel %vm1058, 1, 0
    %v1075 = vsel %vm1059, 1, 0
    %v1076 = vsel %vm1060, 1, 0
    %v1077 = vsel %vm1061, 1, 0
    %v1078 = vsel %vm1062, 1, 0
    %v1079 = vsel %vm1063, 1, 0
    %vm1080 = vcmp.eq.s32.totalorder %v1064, 1
    %vm1081 = vcmp.eq.s32.totalorder %v1065, 1
    %vm1082 = vcmp.eq.s32.totalorder %v1066, 1
    %vm1083 = vcmp.eq.s32.totalorder %v1067, 1
    %vm1084 = vcmp.eq.s32.totalorder %v1068, 1
    %vm1085 = vcmp.eq.s32.totalorder %v1069, 1
    %vm1086 = vcmp.eq.s32.totalorder %v1070, 1
    %vm1087 = vcmp.eq.s32.totalorder %v1071, 1
    %vm1088 = vcmp.eq.s32.totalorder %v1072, 1
    %vm1089 = vcmp.eq.s32.totalorder %v1073, 1
    %vm1090 = vcmp.eq.s32.totalorder %v1074, 1
    %vm1091 = vcmp.eq.s32.totalorder %v1075, 1
    %vm1092 = vcmp.eq.s32.totalorder %v1076, 1
    %vm1093 = vcmp.eq.s32.totalorder %v1077, 1
    %vm1094 = vcmp.eq.s32.totalorder %v1078, 1
    %vm1095 = vcmp.eq.s32.totalorder %v1079, 1
    %v1096 = vsel %vm1080, %v998, 0.0
    %v1097 = vsel %vm1080, %v999, 0.0
    %v1098 = vsel %vm1081, %v1000, 0.0
    %v1099 = vsel %vm1081, %v1001, 0.0
    %v1100 = vsel %vm1082, %v1002, 0.0
    %v1101 = vsel %vm1082, %v1003, 0.0
    %v1102 = vsel %vm1083, %v1004, 0.0
    %v1103 = vsel %vm1083, %v1005, 0.0
    %v1104 = vsel %vm1084, %v1006, 0.0
    %v1105 = vsel %vm1084, %v1007, 0.0
    %v1106 = vsel %vm1085, %v1008, 0.0
    %v1107 = vsel %vm1085, %v1009, 0.0
    %v1108 = vsel %vm1086, %v1010, 0.0
    %v1109 = vsel %vm1086, %v1011, 0.0
    %v1110 = vsel %vm1087, %v1012, 0.0
    %v1111 = vsel %vm1087, %v1013, 0.0
    %v1112 = vsel %vm1088, %v1014, 0.0
    %v1113 = vsel %vm1088, %v1015, 0.0
    %v1114 = vsel %vm1089, %v1016, 0.0
    %v1115 = vsel %vm1089, %v1017, 0.0
    %v1116 = vsel %vm1090, %v1018, 0.0
    %v1117 = vsel %vm1090, %v1019, 0.0
    %v1118 = vsel %vm1091, %v1020, 0.0
    %v1119 = vsel %vm1091, %v1021, 0.0
    %v1120 = vsel %vm1092, %v1022, 0.0
    %v1121 = vsel %vm1092, %v1023, 0.0
    %v1122 = vsel %vm1093, %v1024, 0.0
    %v1123 = vsel %vm1093, %v1025, 0.0
    %v1124 = vsel %vm1094, %v1026, 0.0
    %v1125 = vsel %vm1094, %v1027, 0.0
    %v1126 = vsel %vm1095, %v1028, 0.0
    %v1127 = vsel %vm1095, %v1029, 0.0
    %v1128 = vmul.f32 %v1096, %v1096
    %v1129 = vmul.f32 %v1097, %v1097
    %v1130 = vmul.f32 %v1098, %v1098
    %v1131 = vmul.f32 %v1099, %v1099
    %v1132 = vmul.f32 %v1100, %v1100
    %v1133 = vmul.f32 %v1101, %v1101
    %v1134 = vmul.f32 %v1102, %v1102
    %v1135 = vmul.f32 %v1103, %v1103
    %v1136 = vmul.f32 %v1104, %v1104
    %v1137 = vmul.f32 %v1105, %v1105
    %v1138 = vmul.f32 %v1106, %v1106
    %v1139 = vmul.f32 %v1107, %v1107
    %v1140 = vmul.f32 %v1108, %v1108
    %v1141 = vmul.f32 %v1109, %v1109
    %v1142 = vmul.f32 %v1110, %v1110
    %v1143 = vmul.f32 %v1111, %v1111
    %v1144 = vmul.f32 %v1112, %v1112
    %v1145 = vmul.f32 %v1113, %v1113
    %v1146 = vmul.f32 %v1114, %v1114
    %v1147 = vmul.f32 %v1115, %v1115
    %v1148 = vmul.f32 %v1116, %v1116
    %v1149 = vmul.f32 %v1117, %v1117
    %v1150 = vmul.f32 %v1118, %v1118
    %v1151 = vmul.f32 %v1119, %v1119
    %v1152 = vmul.f32 %v1120, %v1120
    %v1153 = vmul.f32 %v1121, %v1121
    %v1154 = vmul.f32 %v1122, %v1122
    %v1155 = vmul.f32 %v1123, %v1123
    %v1156 = vmul.f32 %v1124, %v1124
    %v1157 = vmul.f32 %v1125, %v1125
    %v1158 = vmul.f32 %v1126, %v1126
    %v1159 = vmul.f32 %v1127, %v1127
    %v1160 = vadd.f32 %v1128, %v1129
    %v1161 = vadd.f32 %v1160, %v1130
    %v1162 = vadd.f32 %v1161, %v1131
    %v1163 = vadd.f32 %v1162, %v1132
    %v1164 = vadd.f32 %v1163, %v1133
    %v1165 = vadd.f32 %v1164, %v1134
    %v1166 = vadd.f32 %v1165, %v1135
    %v1167 = vadd.f32 %v1166, %v1136
    %v1168 = vadd.f32 %v1167, %v1137
    %v1169 = vadd.f32 %v1168, %v1138
    %v1170 = vadd.f32 %v1169, %v1139
    %v1171 = vadd.f32 %v1170, %v1140
    %v1172 = vadd.f32 %v1171, %v1141
    %v1173 = vadd.f32 %v1172, %v1142
    %v1174 = vadd.f32 %v1173, %v1143
    %v1175 = vadd.f32 %v1174, %v1144
    %v1176 = vadd.f32 %v1175, %v1145
    %v1177 = vadd.f32 %v1176, %v1146
    %v1178 = vadd.f32 %v1177, %v1147
    %v1179 = vadd.f32 %v1178, %v1148
    %v1180 = vadd.f32 %v1179, %v1149
    %v1181 = vadd.f32 %v1180, %v1150
    %v1182 = vadd.f32 %v1181, %v1151
    %v1183 = vadd.f32 %v1182, %v1152
    %v1184 = vadd.f32 %v1183, %v1153
    %v1185 = vadd.f32 %v1184, %v1154
    %v1186 = vadd.f32 %v1185, %v1155
    %v1187 = vadd.f32 %v1186, %v1156
    %v1188 = vadd.f32 %v1187, %v1157
    %v1189 = vadd.f32 %v1188, %v1158
    %v1190 = vadd.f32 %v1189, %v1159
    %1191 = vadd.xlane.f32.xlu0 %v1190
    %v1192 = vpop.xlane.xlu0 %1191
    %v1193 = vrot.slane %v1192, 4
    %v1194 = vadd.f32 %v1192, %v1193
    %v1195 = vrot.slane %v1194, 2
    %v1196 = vadd.f32 %v1194, %v1195
    %v1197 = vrot.slane %v1196, 1
    %v1198 = vadd.f32 %v1196, %v1197
    %s1199 = vtos %v1198
    %v1200 = vstv %s1199
    %v1201 = vadd.f32 %v994, %v1200
    %v1202 = vsub.f32 0.0, %v435
    %v1203 = vadd.f32 %v1202, %v473
    %v1204 = vadd.f32 %v1203, %v528
    %v1205 = vmul.f32 %v1201, 1.2207031e-05
    %v1206 = vmul.f32 %v563, 0.003125
    %v1207 = vadd.f32 %v1205, %v1206
    %v1208 = vmul.f32 %v1207, 0.0005
    %v1209 = vadd.f32 %v1204, %v1208
    %p1210 = scmp.eq.s32.totalorder 0, 0
    %p1211 = pnand %p1210, %p96
    %p1212 = pneg %p1211
    // Predicated region
    $region30: #{tpu_custom_call.1} parent=1 // pred_check
      _
    $region31: #{tpu_custom_call.1} parent=1 // pred_check_branch
      %1214 = sbr.rel (%p1211) target = $region33
    $region32: #{tpu_custom_call.1} parent=1 // pred_region
      %v1215 = vld [vmem:[%s1] sm:$0x3]
      %v1216 = vld [vmem:[#allocation7] sm:$0xff]
      %v1219 = vcombine.low %v101, %v102
      %v1221 = vunpack.c.l.s4 1966171168
      %v1222 = vunpack.c.0.s8 %v1221
      %v1223 = vlaneseq
      %v1224 = vshrl.u32 %v1223, 7
      %v1225 = vsub.s32 %v1222, %v1224
      %v1226 = vrot.slane %v1219, %v1225
      %v1228 = vunpack.c.l.s4 1966171168
      %v1229 = vunpack.c.0.s8 %v1228
      %v1230 = vlaneseq
      %v1231 = vshrl.u32 %v1230, 7
      %v1232 = vsub.s32 %v1229, %v1231
      %v1233 = vrot.slane %v1226, %v1232
      %v1235 = vmul.f32 %v1215, %v1233
      %v1237 = vlaneseq
      %v1238 = vshrl.u32 %v1237, 7
      %v1239 = vsub.s32 0, %v1238
      %v1240 = vrot.slane %v1235, %v1239
      %v1241 = vlaneseq
      %v1242 = vshrl.u32 %v1241, 7
      %v1243 = vsub.s32 1, %v1242
      %v1244 = vrot.slane %v1235, %v1243
      %v1247 = vsel %vm420, %v1240, 0.0
      %v1248 = vsel %vm420, %v1244, 0.0
      %v1249 = vadd.f32 %v1247, %v1248
      %1250 = vadd.xlane.f32.xlu0 %v1249
      %v1251 = vpop.xlane.xlu0 %1250
      %v1252 = vrot.slane %v1251, 4
      %v1253 = vadd.f32 %v1251, %v1252
      %v1254 = vrot.slane %v1253, 2
      %v1255 = vadd.f32 %v1253, %v1254
      %v1256 = vrot.slane %v1255, 1
      %v1257 = vadd.f32 %v1255, %v1256
      %s1258 = vtos %v1257
      %v1259 = vstv %s1258
      %v1260 = vsub.f32 0.0, %v1259
      %v1261 = vcombine.high %v1226, %v1226
      %v1263 = vunpack.c.l.s4 1966171168
      %v1264 = vunpack.c.0.s8 %v1263
      %v1265 = vlaneseq
      %v1266 = vshrl.u32 %v1265, 7
      %v1267 = vsub.s32 %v1264, %v1266
      %v1268 = vrot.slane %v1261, %v1267
      %v1270 = vmul.f32 %v1215, %v1268
      %v1272 = vlaneseq
      %v1273 = vshrl.u32 %v1272, 7
      %v1274 = vsub.s32 0, %v1273
      %v1275 = vrot.slane %v1270, %v1274
      %v1276 = vlaneseq
      %v1277 = vshrl.u32 %v1276, 7
      %v1278 = vsub.s32 1, %v1277
      %v1279 = vrot.slane %v1270, %v1278
      %v1282 = vsel %vm420, %v1275, 0.0
      %v1283 = vsel %vm420, %v1279, 0.0
      %v1284 = vadd.f32 %v1282, %v1283
      %1285 = vadd.xlane.f32.xlu0 %v1284
      %v1286 = vpop.xlane.xlu0 %1285
      %v1287 = vrot.slane %v1286, 4
      %v1288 = vadd.f32 %v1286, %v1287
      %v1289 = vrot.slane %v1288, 2
      %v1290 = vadd.f32 %v1288, %v1289
      %v1291 = vrot.slane %v1290, 1
      %v1292 = vadd.f32 %v1290, %v1291
      %s1293 = vtos %v1292
      %v1294 = vstv %s1293
      %v1295 = vadd.f32 %v1260, %v1294
      %v1296 = vmul.f32 %v1215, %v1215
      %v1298 = vlaneseq
      %v1299 = vshrl.u32 %v1298, 7
      %v1300 = vsub.s32 0, %v1299
      %v1301 = vrot.slane %v1296, %v1300
      %v1302 = vlaneseq
      %v1303 = vshrl.u32 %v1302, 7
      %v1304 = vsub.s32 1, %v1303
      %v1305 = vrot.slane %v1296, %v1304
      %v1308 = vsel %vm420, %v1301, 0.0
      %v1309 = vsel %vm420, %v1305, 0.0
      %v1310 = vadd.f32 %v1308, %v1309
      %1311 = vadd.xlane.f32.xlu0 %v1310
      %v1312 = vpop.xlane.xlu0 %1311
      %v1313 = vrot.slane %v1312, 4
      %v1314 = vadd.f32 %v1312, %v1313
      %v1315 = vrot.slane %v1314, 2
      %v1316 = vadd.f32 %v1314, %v1315
      %v1317 = vrot.slane %v1316, 1
      %v1318 = vadd.f32 %v1316, %v1317
      %s1319 = vtos %v1318
      %v1320 = vstv %s1319
      %v1321 = vmul.f32 %v1320, 0.0005
      %v1322 = vmul.f32 %v1321, 0.00390625
      %v1323 = vadd.f32 %v1295, %v1322
      %v1324 = vadd.f32 %v1216, %v1323
      %1325 = vst [vmem:[#allocation7] sm:$0xff] %v1324
    $region33: #{tpu_custom_call.1} parent=1 // pred_fallthru
      _
    %v1326 = vld [vmem:[#allocation7] sm:$0xff]
    %v1327 = vadd.f32 %v1326, %v1209
    %1328 = vst [vmem:[#allocation7] sm:$0xff] %v1327
    // Predicated region
    $region34: #{tpu_custom_call.1} parent=1 // pred_check
      _
    $region35: #{tpu_custom_call.1} parent=1 // pred_check_branch
      %1330 = sbr.rel (0) target = $region37
    $region36: #{tpu_custom_call.1} parent=1 // pred_region
      %s1332 = ssub.s32 128, 128
      %1333 = vsyncadd [#allocation4], %s1332
      %s1335 = sshll.u32 [#allocation7], 4
      %s1336 = int_to_ptr.vmem [resolvable:$true] %s1335
      %1338 = dma.vmem_to_hbm [thread:$0]  %s1336, 128, %s4, [#allocation4]
    $region37: #{tpu_custom_call.1} parent=1 // pred_fallthru
      _
    // Predicated region
    $region38: #{tpu_custom_call.1} parent=1 // pred_check
      _
    $region39: #{tpu_custom_call.1} parent=1 // pred_check_branch
      %1340 = sbr.rel (0) target = $region41
    $region40: #{tpu_custom_call.1} parent=1 // pred_region
      %1341 = dma.done [#allocation4], 128
    $region41: #{tpu_custom_call.1} parent=1 // pred_fallthru
      _
    %1342 = vsyncpa [#allocation3], 1
    %1343 = vsyncpa [#allocation6], 1
    %1344 = vsyncpa [#allocation4], 1

</llo_original>
